<compile_context>
chip_gen: v7x
topology: tpu7x:2x2x1
jax: 0.10.0
libtpu: 0.0.40
codegen_flags: <defaults>
</compile_context>

<pallas_src>
import math

import jax
import jax.numpy as jnp
import numpy as np
from jax import lax
from jax.experimental import pallas as pl
from jax.experimental.pallas import tpu as pltpu


# ---------------------------------------------------------------------------
# Fused Pallas kernel: splat G (batch, joint) pairs x all resolutions per step
# ---------------------------------------------------------------------------
def _make_fused_kernel(S, z_list, pad, zpads, G, BP):
    # Static gaussian_3d parameters (sigma=0.25, mean=0.5, amplitude=1.0).
    Wg = float(2 * pad + 1)                 # xy extent of the gaussian table
    mean_u = 0.5 * Wg + 0.5
    over_u = 1.0 / (0.25 * Wg)
    SS = S * S                              # lane-dense stores need SS >= 128 (S >= 12);
                                            # still correct (masked vst) for smaller S.
    pow2 = (S & (S - 1)) == 0
    shift = int(math.log2(S)) if pow2 else 0

    z_consts = []
    for Z, zpad in zip(z_list, zpads):
        Dg = float(2 * zpad + 1)            # z extent of the gaussian table
        z_consts.append((Z, zpad, 0.5 * Dg + 0.5, 1.0 / (0.25 * Dg)))

    def kernel(xy_ref, zidx_ref, *out_refs):
        blk = pl.program_id(0)

        # Lane index over the flattened (y, x) plane: lane l -> y = l//S, x = l%S.
        lane = lax.broadcasted_iota(jnp.int32, (1, SS), 1)
        if pow2:
            xi = lane & (S - 1)
            yi = lane >> shift
        else:
            xi = lane % S
            yi = lane // S
        zi_list = [lax.broadcasted_iota(jnp.int32, (Z, 1), 0) for Z, _, _, _ in z_consts]

        def body(g, carry):
            # Clamp tail pairs of a partial last block: their block rows lie
            # past BP, so the edge-masked writeback drops them anyway.
            i = jnp.minimum(blk * G + g, BP - 1)
            xc = xy_ref[2 * i]                       # int32 x center
            yc = xy_ref[2 * i + 1]                   # int32 y center

            # Destination window clamps (same semantics as the torch slices).
            xd0 = jnp.maximum(xc - pad, 0)
            xd1 = jnp.clip(xc + pad + 1, 0, S)
            yd0 = jnp.maximum(yc - pad, 0)
            yd1 = jnp.clip(yc + pad + 1, 0, S)
            mask_xy = (xi >= xd0) & (xi < xd1) & (yi >= yd0) & (yi < yd1)

            # Source index into the gaussian table = dst - center + pad; inside
            # the masked window it always lies within the table, so the analytic
            # value equals the torch table lookup.
            du = ((xi - xc + pad).astype(jnp.float32) + 1.0 - mean_u) * over_u
            dv = ((yi - yc + pad).astype(jnp.float32) + 1.0 - mean_u) * over_u
            # xy factor: computed ONCE per pair, shared by all resolutions.
            g_xy = jnp.where(mask_xy, jnp.exp(-0.5 * (du * du + dv * dv)), 0.0)  # (1, SS)

            for r, (Z, zpad, mean_r, over_r) in enumerate(z_consts):   # static, small R
                zc = zidx_ref[r * BP + i]            # int32 z center (may be -1)
                zd0 = jnp.maximum(zc - zpad, 0)
                zd1 = jnp.clip(zc + zpad + 1, 0, Z)
                zi = zi_list[r]
                mask_z = (zi >= zd0) & (zi < zd1)
                dr = ((zi - zc + zpad).astype(jnp.float32) + 1.0 - mean_r) * over_r
                g_z = jnp.where(mask_z, jnp.exp(-0.5 * (dr * dr)), 0.0)          # (Z, 1)
                # (Z,1)*(1,SS) -> (Z,SS): 1 vmul + 1 vst per vreg — the only
                # full-volume work.  Dynamic leading-index store is tile-aligned.
                out_refs[r][g] = g_z * g_xy
            return carry

        # Bounded unroll: keeps code size / vreg pressure in check for large G.
        lax.fori_loop(0, G, body, 0, unroll=min(G, 4))

    return kernel


# ---------------------------------------------------------------------------
# Block sizing
# ---------------------------------------------------------------------------
def _block_budget_bytes():
    """~8 MiB output block on v6e/v7x (fast HBM), ~4 MiB on v5e and older."""
    try:
        kind = jax.devices()[0].device_kind.lower()
    except Exception:
        kind = ""
    if any(t in kind for t in ("v2", "v3", "v4", "v5")):
        return 4 << 20
    return 8 << 20


def _choose_group(BP, bytes_per_pair, budget):
    """Pairs per grid step: as large as the block budget allows, while keeping
    >= 2 grid steps (best-effort even) so v7x can shard the parallel axis
    across its 2 TensorCores."""
    g_max = max(1, budget // bytes_per_pair)
    n = pl.cdiv(BP, min(g_max, BP))          # steps needed to respect the budget
    if BP >= 2:
        n = max(n, 2)
        if n % 2:                            # prefer an even step count (v7x)
            n += 1
        n = min(n, BP)
    G = pl.cdiv(BP, n)
    return G, pl.cdiv(BP, G)


# ---------------------------------------------------------------------------
# GaussianVoxel.forward equivalent (glue in plain JAX, splat in Pallas)
# ---------------------------------------------------------------------------
def gaussian_voxel_forward(coords, voxel_z_res_list, heatmap_xy_coeff, size):
    """coords: (B, P, 3) float32 with (x, y, z).  Returns list of voxel grids."""
    B, P, _ = coords.shape
    S = int(size)
    SS = S * S
    c = int(heatmap_xy_coeff)
    pad = 3 * c
    z_last = float(voxel_z_res_list[-1])
    z_list = [int(z) for z in voxel_z_res_list]

    # heatmap_z_coeff = 2*floor((6*c*z_res/z_last + 1)/2) + 1 (static per resolution)
    z_coeffs = [int(2 * math.floor((6 * c * zr / z_last + 1) / 2) + 1) for zr in z_list]
    zpads = [zc // 2 for zc in z_coeffs]

    BP = B * P
    # torch: coords.short() truncates toward zero; so does f32 -> int32 here.
    xy_flat = coords[:, :, 0:2].astype(jnp.int32).reshape(-1)          # (2*BP,)
    z_float = coords[:, :, 2]
    zidx_all = jnp.concatenate(                                        # (R*BP,)
        [(jnp.ceil(z_float * float(zr) / z_last) - 1.0).astype(jnp.int32).reshape(-1)
         for zr in z_list])

    # Padding-aware VMEM accounting: (Z, SS) slabs pad to (ceil(Z/8)*8, ceil(SS/128)*128).
    padded_ss = pl.cdiv(SS, 128) * 128
    bytes_per_pair = sum(pl.cdiv(Z, 8) * 8 for Z in z_list) * padded_ss * 4
    budget = _block_budget_bytes()
    G, num_blocks = _choose_group(BP, bytes_per_pair, budget)
    block_bytes = G * bytes_per_pair
    # Cover the double-buffered output blocks (+ headroom); stays well under
    # every generation's scoped/physical VMEM with the budgets above.
    vmem_limit = int(max(2 * block_bytes + (4 << 20), 16 << 20))

    # TODO(synk): if downstream tolerates bf16, emit bfloat16 output (halves the
    # HBM writeback, ~2x at the roofline); kept f32 to match the PyTorch reference.
    # TODO(synk): for Z < 8 the (G, Z, SS) VMEM block pads Z to 8 sublanes
    # (~1.3x VMEM for the default z list; writeback DMA runs of Z*S*S*4 B); a
    # fully dense (BP*Z, S*S) layout would need dynamic-sublane-offset stores,
    # so the tile-aligned leading-index store + padded accounting is used instead.
    kernel = _make_fused_kernel(S, z_list, pad, zpads, G, BP)
    grid_spec = pltpu.PrefetchScalarGridSpec(
        num_scalar_prefetch=2,                       # xy_flat, zidx_all -> SMEM
        grid=(num_blocks,),
        in_specs=[],
        out_specs=[pl.BlockSpec((G, Z, SS), lambda i, xy_s, z_s: (i, 0, 0))
                   for Z in z_list],
    )
    outs = pl.pallas_call(
        kernel,
        out_shape=tuple(jax.ShapeDtypeStruct((BP, Z, SS), jnp.float32) for Z in z_list),
        grid_spec=grid_spec,
        compiler_params=pltpu.CompilerParams(
            dimension_semantics=("parallel",),
            vmem_limit_bytes=vmem_limit),
    )(xy_flat, zidx_all)

    # Free reshape: (B*P, Z, S*S) row-major == (B, P, Z, S, S) row-major.
    return [o.reshape(B, P, Z, S, S) for o, Z in zip(outs, z_list)]


# ---------------------------------------------------------------------------
# NumPy reference reproducing the exact PyTorch slice-assignment semantics
# ---------------------------------------------------------------------------
def _gaussian_3d_np(size, depth, sigma=0.25, mean=0.5, amplitude=1.0):
    W = float(size)
    Dd = float(depth)
    mean_u = mean * W + 0.5
    mean_v = mean * W + 0.5
    mean_r = mean * Dd + 0.5
    osu = 1.0 / (sigma * W)
    osv = 1.0 / (sigma * W)
    osr = 1.0 / (sigma * Dd)
    x = np.arange(0, W, 1, dtype=np.float32)
    y = x.reshape(-1, 1)
    z = np.arange(0, Dd, 1, dtype=np.float32).reshape(-1, 1, 1)
    du = (x + 1 - mean_u) * osu
    dv = (y + 1 - mean_v) * osv
    dr = (z + 1 - mean_r) * osr
    return amplitude * np.exp(-0.5 * (du * du + dv * dv + dr * dr))


def _reference_forward(coords_np, voxel_z_res_list, heatmap_xy_coeff, size):
    B, P, _ = coords_np.shape
    S = int(size)
    c = int(heatmap_xy_coeff)
    pad = 3 * c
    z_last = float(voxel_z_res_list[-1])
    z_coeffs = [int(2 * math.floor((6 * c * zr / z_last + 1) / 2) + 1)
                for zr in voxel_z_res_list]
    gaussians = [_gaussian_3d_np(6 * c + 1, d) for d in z_coeffs]
    xy = coords_np[:, :, 0:2].astype(np.int32)
    zf = coords_np[:, :, 2].astype(np.float32)
    out = []
    for zr, zc_, g in zip(voxel_z_res_list, z_coeffs, gaussians):
        Z = int(zr)
        zpad = zc_ // 2
        zidx = (np.ceil(zf * np.float32(zr) / np.float32(z_last)) - 1).astype(np.int32)
        vol = np.zeros((B, P, Z, S, S), np.float32)
        for b in range(B):
            for j in range(P):
                x0, y0, z0 = int(xy[b, j, 0]), int(xy[b, j, 1]), int(zidx[b, j])
                xd0, xd1 = max(0, x0 - pad), max(0, min(S, x0 + pad + 1))
                yd0, yd1 = max(0, y0 - pad), max(0, min(S, y0 + pad + 1))
                zd0, zd1 = max(0, z0 - zpad), max(0, min(Z, z0 + zpad + 1))
                xs0, xs1 = max(0, pad - x0), pad + 1 + min(pad, S - x0 - 1)
                ys0, ys1 = max(0, pad - y0), pad + 1 + min(pad, S - y0 - 1)
                zs0, zs1 = max(0, zpad - z0), zpad + 1 + min(zpad, Z - z0 - 1)
                vol[b, j, zd0:zd1, yd0:yd1, xd0:xd1] = g[zs0:zs1, ys0:ys1, xs0:xs1]
        out.append(vol)
    return out


if __name__ == "__main__":
    # Small deterministic configuration (module args: voxel_z_res_list,
    # heatmap_xy_coeff, batch, part, size).
    B, P, S = 2, 4, 16
    heatmap_xy_coeff = 1
    voxel_z_res_list = [2, 4, 8, 16]

    key = jax.random.PRNGKey(0)
    coords = jax.random.uniform(key, (B, P, 3), dtype=jnp.float32)
    coords = coords * jnp.array([S, S, voxel_z_res_list[-1]], dtype=jnp.float32)

    voxels = gaussian_voxel_forward(coords, voxel_z_res_list, heatmap_xy_coeff, S)
    voxels = [jax.block_until_ready(v) for v in voxels]

    # Correctness check against the PyTorch-semantics reference.
    ref = _reference_forward(np.asarray(jax.device_get(coords)),
                             voxel_z_res_list, heatmap_xy_coeff, S)
    for got, want in zip(voxels, ref):
        np.testing.assert_allclose(np.asarray(got), want, rtol=1e-4, atol=1e-5)

    print("KERNEL_OK")
</pallas_src>

<mosaic_0001>
module attributes {stable_mosaic.version = 11 : i64} {
  func.func @kernel(%arg0: i32, %arg1: memref<16xi32, #tpu.memory_space<smem>>, %arg2: memref<32xi32, #tpu.memory_space<smem>>, %arg3: memref<4x2x256xf32, #tpu.memory_space<vmem>>, %arg4: memref<4x4x256xf32, #tpu.memory_space<vmem>>, %arg5: memref<4x8x256xf32, #tpu.memory_space<vmem>>, %arg6: memref<4x16x256xf32, #tpu.memory_space<vmem>>) attributes {dimension_semantics = [#tpu.dimension_semantics<parallel>], iteration_bounds = array<i64: 2>, scalar_prefetch = 2 : i64, scratch_operands = 0 : i64, tpu.core_type = #tpu.core_type<tc>, window_params = [{transform_indices = @transform_0, window_bounds = array<i64: 4, 2, 256>}, {transform_indices = @transform_1, window_bounds = array<i64: 4, 4, 256>}, {transform_indices = @transform_2, window_bounds = array<i64: 4, 8, 256>}, {transform_indices = @transform_3, window_bounds = array<i64: 4, 16, 256>}]} {
    %0 = tpu.iota {dimensions = array<i32: 1>} : vector<1x256xi32>
    %c15_i32 = arith.constant 15 : i32
    %1 = vector.broadcast %c15_i32 : i32 to vector<1x256xi32>
    %2 = arith.andi %0, %1 : vector<1x256xi32>
    %c4_i32 = arith.constant 4 : i32
    %3 = vector.broadcast %c4_i32 : i32 to vector<1x256xi32>
    %4 = arith.shrsi %0, %3 : vector<1x256xi32>
    %5 = tpu.iota {dimensions = array<i32: 0>} : vector<2x1xi32>
    %6 = tpu.iota {dimensions = array<i32: 0>} : vector<4x1xi32>
    %7 = tpu.iota {dimensions = array<i32: 0>} : vector<8x1xi32>
    %8 = tpu.iota {dimensions = array<i32: 0>} : vector<16x1xi32>
    %c0_i32 = arith.constant 0 : i32
    %c4_i32_0 = arith.constant 4 : i32
    %9 = arith.muli %arg0, %c4_i32_0 : i32
    %10 = arith.addi %9, %c0_i32 : i32
    %c7_i32 = arith.constant 7 : i32
    %11 = arith.minsi %10, %c7_i32 : i32
    %c2_i32 = arith.constant 2 : i32
    %12 = arith.muli %c2_i32, %11 : i32
    %13 = arith.index_cast %12 : i32 to index
    %14 = memref.load %arg1[%13] : memref<16xi32, #tpu.memory_space<smem>>
    %c2_i32_1 = arith.constant 2 : i32
    %15 = arith.muli %c2_i32_1, %11 : i32
    %c1_i32 = arith.constant 1 : i32
    %16 = arith.addi %15, %c1_i32 : i32
    %17 = arith.index_cast %16 : i32 to index
    %18 = memref.load %arg1[%17] : memref<16xi32, #tpu.memory_space<smem>>
    %c3_i32 = arith.constant 3 : i32
    %19 = arith.subi %14, %c3_i32 : i32
    %c0_i32_2 = arith.constant 0 : i32
    %20 = arith.maxsi %19, %c0_i32_2 : i32
    %c3_i32_3 = arith.constant 3 : i32
    %21 = arith.addi %14, %c3_i32_3 : i32
    %c1_i32_4 = arith.constant 1 : i32
    %22 = arith.addi %21, %c1_i32_4 : i32
    %c0_i32_5 = arith.constant 0 : i32
    %c16_i32 = arith.constant 16 : i32
    %23 = arith.maxsi %c0_i32_5, %22 : i32
    %24 = arith.minsi %c16_i32, %23 : i32
    %c3_i32_6 = arith.constant 3 : i32
    %25 = arith.subi %18, %c3_i32_6 : i32
    %c0_i32_7 = arith.constant 0 : i32
    %26 = arith.maxsi %25, %c0_i32_7 : i32
    %c3_i32_8 = arith.constant 3 : i32
    %27 = arith.addi %18, %c3_i32_8 : i32
    %c1_i32_9 = arith.constant 1 : i32
    %28 = arith.addi %27, %c1_i32_9 : i32
    %c0_i32_10 = arith.constant 0 : i32
    %c16_i32_11 = arith.constant 16 : i32
    %29 = arith.maxsi %c0_i32_10, %28 : i32
    %30 = arith.minsi %c16_i32_11, %29 : i32
    %31 = vector.broadcast %20 : i32 to vector<1x256xi32>
    %32 = arith.cmpi sge, %2, %31 : vector<1x256xi32>
    %33 = vector.broadcast %24 : i32 to vector<1x256xi32>
    %34 = arith.cmpi slt, %2, %33 : vector<1x256xi32>
    %35 = arith.andi %32, %34 : vector<1x256xi1>
    %36 = vector.broadcast %26 : i32 to vector<1x256xi32>
    %37 = arith.cmpi sge, %4, %36 : vector<1x256xi32>
    %38 = arith.andi %35, %37 : vector<1x256xi1>
    %39 = vector.broadcast %30 : i32 to vector<1x256xi32>
    %40 = arith.cmpi slt, %4, %39 : vector<1x256xi32>
    %41 = arith.andi %38, %40 : vector<1x256xi1>
    %42 = vector.broadcast %14 : i32 to vector<1x256xi32>
    %43 = arith.subi %2, %42 : vector<1x256xi32>
    %c3_i32_12 = arith.constant 3 : i32
    %44 = vector.broadcast %c3_i32_12 : i32 to vector<1x256xi32>
    %45 = arith.addi %43, %44 : vector<1x256xi32>
    %46 = arith.sitofp %45 : vector<1x256xi32> to vector<1x256xf32>
    %cst = arith.constant 1.000000e+00 : f32
    %47 = vector.broadcast %cst : f32 to vector<1x256xf32>
    %48 = arith.addf %46, %47 : vector<1x256xf32>
    %cst_13 = arith.constant 4.000000e+00 : f32
    %49 = vector.broadcast %cst_13 : f32 to vector<1x256xf32>
    %50 = arith.subf %48, %49 : vector<1x256xf32>
    %cst_14 = arith.constant 0.571428597 : f32
    %51 = vector.broadcast %cst_14 : f32 to vector<1x256xf32>
    %52 = arith.mulf %50, %51 : vector<1x256xf32>
    %53 = vector.broadcast %18 : i32 to vector<1x256xi32>
    %54 = arith.subi %4, %53 : vector<1x256xi32>
    %c3_i32_15 = arith.constant 3 : i32
    %55 = vector.broadcast %c3_i32_15 : i32 to vector<1x256xi32>
    %56 = arith.addi %54, %55 : vector<1x256xi32>
    %57 = arith.sitofp %56 : vector<1x256xi32> to vector<1x256xf32>
    %cst_16 = arith.constant 1.000000e+00 : f32
    %58 = vector.broadcast %cst_16 : f32 to vector<1x256xf32>
    %59 = arith.addf %57, %58 : vector<1x256xf32>
    %cst_17 = arith.constant 4.000000e+00 : f32
    %60 = vector.broadcast %cst_17 : f32 to vector<1x256xf32>
    %61 = arith.subf %59, %60 : vector<1x256xf32>
    %cst_18 = arith.constant 0.571428597 : f32
    %62 = vector.broadcast %cst_18 : f32 to vector<1x256xf32>
    %63 = arith.mulf %61, %62 : vector<1x256xf32>
    %64 = arith.mulf %52, %52 : vector<1x256xf32>
    %65 = arith.mulf %63, %63 : vector<1x256xf32>
    %66 = arith.addf %64, %65 : vector<1x256xf32>
    %cst_19 = arith.constant -5.000000e-01 : f32
    %67 = vector.broadcast %cst_19 : f32 to vector<1x256xf32>
    %68 = arith.mulf %67, %66 : vector<1x256xf32>
    %69 = math.exp %68 : vector<1x256xf32>
    %cst_20 = arith.constant 0.000000e+00 : f32
    %70 = vector.broadcast %cst_20 : f32 to vector<1x256xf32>
    %71 = arith.select %41, %69, %70 : vector<1x256xi1>, vector<1x256xf32>
    %c0_i32_21 = arith.constant 0 : i32
    %72 = arith.addi %c0_i32_21, %11 : i32
    %73 = arith.index_cast %72 : i32 to index
    %74 = memref.load %arg2[%73] : memref<32xi32, #tpu.memory_space<smem>>
    %c0_i32_22 = arith.constant 0 : i32
    %75 = arith.subi %74, %c0_i32_22 : i32
    %c0_i32_23 = arith.constant 0 : i32
    %76 = arith.maxsi %75, %c0_i32_23 : i32
    %c0_i32_24 = arith.constant 0 : i32
    %77 = arith.addi %74, %c0_i32_24 : i32
    %c1_i32_25 = arith.constant 1 : i32
    %78 = arith.addi %77, %c1_i32_25 : i32
    %c0_i32_26 = arith.constant 0 : i32
    %c2_i32_27 = arith.constant 2 : i32
    %79 = arith.maxsi %c0_i32_26, %78 : i32
    %80 = arith.minsi %c2_i32_27, %79 : i32
    %81 = vector.broadcast %76 : i32 to vector<2x1xi32>
    %82 = arith.cmpi sge, %5, %81 : vector<2x1xi32>
    %83 = vector.broadcast %80 : i32 to vector<2x1xi32>
    %84 = arith.cmpi slt, %5, %83 : vector<2x1xi32>
    %85 = arith.andi %82, %84 : vector<2x1xi1>
    %86 = vector.broadcast %74 : i32 to vector<2x1xi32>
    %87 = arith.subi %5, %86 : vector<2x1xi32>
    %c0_i32_28 = arith.constant 0 : i32
    %88 = vector.broadcast %c0_i32_28 : i32 to vector<2x1xi32>
    %89 = arith.addi %87, %88 : vector<2x1xi32>
    %90 = arith.sitofp %89 : vector<2x1xi32> to vector<2x1xf32>
    %cst_29 = arith.constant 1.000000e+00 : f32
    %91 = vector.broadcast %cst_29 : f32 to vector<2x1xf32>
    %92 = arith.addf %90, %91 : vector<2x1xf32>
    %cst_30 = arith.constant 1.000000e+00 : f32
    %93 = vector.broadcast %cst_30 : f32 to vector<2x1xf32>
    %94 = arith.subf %92, %93 : vector<2x1xf32>
    %cst_31 = arith.constant 4.000000e+00 : f32
    %95 = vector.broadcast %cst_31 : f32 to vector<2x1xf32>
    %96 = arith.mulf %94, %95 : vector<2x1xf32>
    %97 = arith.mulf %96, %96 : vector<2x1xf32>
    %cst_32 = arith.constant -5.000000e-01 : f32
    %98 = vector.broadcast %cst_32 : f32 to vector<2x1xf32>
    %99 = arith.mulf %98, %97 : vector<2x1xf32>
    %100 = math.exp %99 : vector<2x1xf32>
    %cst_33 = arith.constant 0.000000e+00 : f32
    %101 = vector.broadcast %cst_33 : f32 to vector<2x1xf32>
    %102 = arith.select %85, %100, %101 : vector<2x1xi1>, vector<2x1xf32>
    %103 = vector.broadcast %102 : vector<2x1xf32> to vector<2x256xf32>
    %104 = vector.broadcast %71 : vector<1x256xf32> to vector<2x256xf32>
    %105 = arith.mulf %103, %104 : vector<2x256xf32>
    %106 = arith.index_cast %c0_i32 : i32 to index
    %c0 = arith.constant 0 : index
    %c0_34 = arith.constant 0 : index
    %107 = vector.load %arg3[%106, %c0, %c0_34] : memref<4x2x256xf32, #tpu.memory_space<vmem>>, vector<1x2x256xf32>
    %108 = vector.shape_cast %107 : vector<1x2x256xf32> to vector<2x256xf32>
    %109 = vector.shape_cast %105 : vector<2x256xf32> to vector<1x2x256xf32>
    tpu.vector_store %arg3[%106, %c0, %c0_34], %109 {strides = array<i32>} : memref<4x2x256xf32, #tpu.memory_space<vmem>>, vector<1x2x256xf32>,
    %c8_i32 = arith.constant 8 : i32
    %110 = arith.addi %c8_i32, %11 : i32
    %111 = arith.index_cast %110 : i32 to index
    %112 = memref.load %arg2[%111] : memref<32xi32, #tpu.memory_space<smem>>
    %c1_i32_35 = arith.constant 1 : i32
    %113 = arith.subi %112, %c1_i32_35 : i32
    %c0_i32_36 = arith.constant 0 : i32
    %114 = arith.maxsi %113, %c0_i32_36 : i32
    %c1_i32_37 = arith.constant 1 : i32
    %115 = arith.addi %112, %c1_i32_37 : i32
    %c1_i32_38 = arith.constant 1 : i32
    %116 = arith.addi %115, %c1_i32_38 : i32
    %c0_i32_39 = arith.constant 0 : i32
    %c4_i32_40 = arith.constant 4 : i32
    %117 = arith.maxsi %c0_i32_39, %116 : i32
    %118 = arith.minsi %c4_i32_40, %117 : i32
    %119 = vector.broadcast %114 : i32 to vector<4x1xi32>
    %120 = arith.cmpi sge, %6, %119 : vector<4x1xi32>
    %121 = vector.broadcast %118 : i32 to vector<4x1xi32>
    %122 = arith.cmpi slt, %6, %121 : vector<4x1xi32>
    %123 = arith.andi %120, %122 : vector<4x1xi1>
    %124 = vector.broadcast %112 : i32 to vector<4x1xi32>
    %125 = arith.subi %6, %124 : vector<4x1xi32>
    %c1_i32_41 = arith.constant 1 : i32
    %126 = vector.broadcast %c1_i32_41 : i32 to vector<4x1xi32>
    %127 = arith.addi %125, %126 : vector<4x1xi32>
    %128 = arith.sitofp %127 : vector<4x1xi32> to vector<4x1xf32>
    %cst_42 = arith.constant 1.000000e+00 : f32
    %129 = vector.broadcast %cst_42 : f32 to vector<4x1xf32>
    %130 = arith.addf %128, %129 : vector<4x1xf32>
    %cst_43 = arith.constant 2.000000e+00 : f32
    %131 = vector.broadcast %cst_43 : f32 to vector<4x1xf32>
    %132 = arith.subf %130, %131 : vector<4x1xf32>
    %cst_44 = arith.constant 1.33333337 : f32
    %133 = vector.broadcast %cst_44 : f32 to vector<4x1xf32>
    %134 = arith.mulf %132, %133 : vector<4x1xf32>
    %135 = arith.mulf %134, %134 : vector<4x1xf32>
    %cst_45 = arith.constant -5.000000e-01 : f32
    %136 = vector.broadcast %cst_45 : f32 to vector<4x1xf32>
    %137 = arith.mulf %136, %135 : vector<4x1xf32>
    %138 = math.exp %137 : vector<4x1xf32>
    %cst_46 = arith.constant 0.000000e+00 : f32
    %139 = vector.broadcast %cst_46 : f32 to vector<4x1xf32>
    %140 = arith.select %123, %138, %139 : vector<4x1xi1>, vector<4x1xf32>
    %141 = vector.broadcast %140 : vector<4x1xf32> to vector<4x256xf32>
    %142 = vector.broadcast %71 : vector<1x256xf32> to vector<4x256xf32>
    %143 = arith.mulf %141, %142 : vector<4x256xf32>
    %144 = arith.index_cast %c0_i32 : i32 to index
    %c0_47 = arith.constant 0 : index
    %c0_48 = arith.constant 0 : index
    %145 = vector.load %arg4[%144, %c0_47, %c0_48] : memref<4x4x256xf32, #tpu.memory_space<vmem>>, vector<1x4x256xf32>
    %146 = vector.shape_cast %145 : vector<1x4x256xf32> to vector<4x256xf32>
    %147 = vector.shape_cast %143 : vector<4x256xf32> to vector<1x4x256xf32>
    tpu.vector_store %arg4[%144, %c0_47, %c0_48], %147 {strides = array<i32>} : memref<4x4x256xf32, #tpu.memory_space<vmem>>, vector<1x4x256xf32>,
    %c16_i32_49 = arith.constant 16 : i32
    %148 = arith.addi %c16_i32_49, %11 : i32
    %149 = arith.index_cast %148 : i32 to index
    %150 = memref.load %arg2[%149] : memref<32xi32, #tpu.memory_space<smem>>
    %c2_i32_50 = arith.constant 2 : i32
    %151 = arith.subi %150, %c2_i32_50 : i32
    %c0_i32_51 = arith.constant 0 : i32
    %152 = arith.maxsi %151, %c0_i32_51 : i32
    %c2_i32_52 = arith.constant 2 : i32
    %153 = arith.addi %150, %c2_i32_52 : i32
    %c1_i32_53 = arith.constant 1 : i32
    %154 = arith.addi %153, %c1_i32_53 : i32
    %c0_i32_54 = arith.constant 0 : i32
    %c8_i32_55 = arith.constant 8 : i32
    %155 = arith.maxsi %c0_i32_54, %154 : i32
    %156 = arith.minsi %c8_i32_55, %155 : i32
    %157 = vector.broadcast %152 : i32 to vector<8x1xi32>
    %158 = arith.cmpi sge, %7, %157 : vector<8x1xi32>
    %159 = vector.broadcast %156 : i32 to vector<8x1xi32>
    %160 = arith.cmpi slt, %7, %159 : vector<8x1xi32>
    %161 = arith.andi %158, %160 : vector<8x1xi1>
    %162 = vector.broadcast %150 : i32 to vector<8x1xi32>
    %163 = arith.subi %7, %162 : vector<8x1xi32>
    %c2_i32_56 = arith.constant 2 : i32
    %164 = vector.broadcast %c2_i32_56 : i32 to vector<8x1xi32>
    %165 = arith.addi %163, %164 : vector<8x1xi32>
    %166 = arith.sitofp %165 : vector<8x1xi32> to vector<8x1xf32>
    %cst_57 = arith.constant 1.000000e+00 : f32
    %167 = vector.broadcast %cst_57 : f32 to vector<8x1xf32>
    %168 = arith.addf %166, %167 : vector<8x1xf32>
    %cst_58 = arith.constant 3.000000e+00 : f32
    %169 = vector.broadcast %cst_58 : f32 to vector<8x1xf32>
    %170 = arith.subf %168, %169 : vector<8x1xf32>
    %cst_59 = arith.constant 8.000000e-01 : f32
    %171 = vector.broadcast %cst_59 : f32 to vector<8x1xf32>
    %172 = arith.mulf %170, %171 : vector<8x1xf32>
    %173 = arith.mulf %172, %172 : vector<8x1xf32>
    %cst_60 = arith.constant -5.000000e-01 : f32
    %174 = vector.broadcast %cst_60 : f32 to vector<8x1xf32>
    %175 = arith.mulf %174, %173 : vector<8x1xf32>
    %176 = math.exp %175 : vector<8x1xf32>
    %cst_61 = arith.constant 0.000000e+00 : f32
    %177 = vector.broadcast %cst_61 : f32 to vector<8x1xf32>
    %178 = arith.select %161, %176, %177 : vector<8x1xi1>, vector<8x1xf32>
    %179 = vector.broadcast %178 : vector<8x1xf32> to vector<8x256xf32>
    %180 = vector.broadcast %71 : vector<1x256xf32> to vector<8x256xf32>
    %181 = arith.mulf %179, %180 : vector<8x256xf32>
    %182 = arith.index_cast %c0_i32 : i32 to index
    %c0_62 = arith.constant 0 : index
    %c0_63 = arith.constant 0 : index
    %183 = vector.load %arg5[%182, %c0_62, %c0_63] : memref<4x8x256xf32, #tpu.memory_space<vmem>>, vector<1x8x256xf32>
    %184 = vector.shape_cast %183 : vector<1x8x256xf32> to vector<8x256xf32>
    %185 = vector.shape_cast %181 : vector<8x256xf32> to vector<1x8x256xf32>
    tpu.vector_store %arg5[%182, %c0_62, %c0_63], %185 {strides = array<i32>} : memref<4x8x256xf32, #tpu.memory_space<vmem>>, vector<1x8x256xf32>,
    %c24_i32 = arith.constant 24 : i32
    %186 = arith.addi %c24_i32, %11 : i32
    %187 = arith.index_cast %186 : i32 to index
    %188 = memref.load %arg2[%187] : memref<32xi32, #tpu.memory_space<smem>>
    %c3_i32_64 = arith.constant 3 : i32
    %189 = arith.subi %188, %c3_i32_64 : i32
    %c0_i32_65 = arith.constant 0 : i32
    %190 = arith.maxsi %189, %c0_i32_65 : i32
    %c3_i32_66 = arith.constant 3 : i32
    %191 = arith.addi %188, %c3_i32_66 : i32
    %c1_i32_67 = arith.constant 1 : i32
    %192 = arith.addi %191, %c1_i32_67 : i32
    %c0_i32_68 = arith.constant 0 : i32
    %c16_i32_69 = arith.constant 16 : i32
    %193 = arith.maxsi %c0_i32_68, %192 : i32
    %194 = arith.minsi %c16_i32_69, %193 : i32
    %195 = vector.broadcast %190 : i32 to vector<16x1xi32>
    %196 = arith.cmpi sge, %8, %195 : vector<16x1xi32>
    %197 = vector.broadcast %194 : i32 to vector<16x1xi32>
    %198 = arith.cmpi slt, %8, %197 : vector<16x1xi32>
    %199 = arith.andi %196, %198 : vector<16x1xi1>
    %200 = vector.broadcast %188 : i32 to vector<16x1xi32>
    %201 = arith.subi %8, %200 : vector<16x1xi32>
    %c3_i32_70 = arith.constant 3 : i32
    %202 = vector.broadcast %c3_i32_70 : i32 to vector<16x1xi32>
    %203 = arith.addi %201, %202 : vector<16x1xi32>
    %204 = arith.sitofp %203 : vector<16x1xi32> to vector<16x1xf32>
    %cst_71 = arith.constant 1.000000e+00 : f32
    %205 = vector.broadcast %cst_71 : f32 to vector<16x1xf32>
    %206 = arith.addf %204, %205 : vector<16x1xf32>
    %cst_72 = arith.constant 4.000000e+00 : f32
    %207 = vector.broadcast %cst_72 : f32 to vector<16x1xf32>
    %208 = arith.subf %206, %207 : vector<16x1xf32>
    %cst_73 = arith.constant 0.571428597 : f32
    %209 = vector.broadcast %cst_73 : f32 to vector<16x1xf32>
    %210 = arith.mulf %208, %209 : vector<16x1xf32>
    %211 = arith.mulf %210, %210 : vector<16x1xf32>
    %cst_74 = arith.constant -5.000000e-01 : f32
    %212 = vector.broadcast %cst_74 : f32 to vector<16x1xf32>
    %213 = arith.mulf %212, %211 : vector<16x1xf32>
    %214 = math.exp %213 : vector<16x1xf32>
    %cst_75 = arith.constant 0.000000e+00 : f32
    %215 = vector.broadcast %cst_75 : f32 to vector<16x1xf32>
    %216 = arith.select %199, %214, %215 : vector<16x1xi1>, vector<16x1xf32>
    %217 = vector.broadcast %216 : vector<16x1xf32> to vector<16x256xf32>
    %218 = vector.broadcast %71 : vector<1x256xf32> to vector<16x256xf32>
    %219 = arith.mulf %217, %218 : vector<16x256xf32>
    %220 = arith.index_cast %c0_i32 : i32 to index
    %c0_76 = arith.constant 0 : index
    %c0_77 = arith.constant 0 : index
    %221 = vector.load %arg6[%220, %c0_76, %c0_77] : memref<4x16x256xf32, #tpu.memory_space<vmem>>, vector<1x16x256xf32>
    %222 = vector.shape_cast %221 : vector<1x16x256xf32> to vector<16x256xf32>
    %223 = vector.shape_cast %219 : vector<16x256xf32> to vector<1x16x256xf32>
    tpu.vector_store %arg6[%220, %c0_76, %c0_77], %223 {strides = array<i32>} : memref<4x16x256xf32, #tpu.memory_space<vmem>>, vector<1x16x256xf32>,
    %c1_i32_78 = arith.constant 1 : i32
    %c4_i32_79 = arith.constant 4 : i32
    %224 = arith.muli %arg0, %c4_i32_79 : i32
    %225 = arith.addi %224, %c1_i32_78 : i32
    %c7_i32_80 = arith.constant 7 : i32
    %226 = arith.minsi %225, %c7_i32_80 : i32
    %c2_i32_81 = arith.constant 2 : i32
    %227 = arith.muli %c2_i32_81, %226 : i32
    %228 = arith.index_cast %227 : i32 to index
    %229 = memref.load %arg1[%228] : memref<16xi32, #tpu.memory_space<smem>>
    %c2_i32_82 = arith.constant 2 : i32
    %230 = arith.muli %c2_i32_82, %226 : i32
    %c1_i32_83 = arith.constant 1 : i32
    %231 = arith.addi %230, %c1_i32_83 : i32
    %232 = arith.index_cast %231 : i32 to index
    %233 = memref.load %arg1[%232] : memref<16xi32, #tpu.memory_space<smem>>
    %c3_i32_84 = arith.constant 3 : i32
    %234 = arith.subi %229, %c3_i32_84 : i32
    %c0_i32_85 = arith.constant 0 : i32
    %235 = arith.maxsi %234, %c0_i32_85 : i32
    %c3_i32_86 = arith.constant 3 : i32
    %236 = arith.addi %229, %c3_i32_86 : i32
    %c1_i32_87 = arith.constant 1 : i32
    %237 = arith.addi %236, %c1_i32_87 : i32
    %c0_i32_88 = arith.constant 0 : i32
    %c16_i32_89 = arith.constant 16 : i32
    %238 = arith.maxsi %c0_i32_88, %237 : i32
    %239 = arith.minsi %c16_i32_89, %238 : i32
    %c3_i32_90 = arith.constant 3 : i32
    %240 = arith.subi %233, %c3_i32_90 : i32
    %c0_i32_91 = arith.constant 0 : i32
    %241 = arith.maxsi %240, %c0_i32_91 : i32
    %c3_i32_92 = arith.constant 3 : i32
    %242 = arith.addi %233, %c3_i32_92 : i32
    %c1_i32_93 = arith.constant 1 : i32
    %243 = arith.addi %242, %c1_i32_93 : i32
    %c0_i32_94 = arith.constant 0 : i32
    %c16_i32_95 = arith.constant 16 : i32
    %244 = arith.maxsi %c0_i32_94, %243 : i32
    %245 = arith.minsi %c16_i32_95, %244 : i32
    %246 = vector.broadcast %235 : i32 to vector<1x256xi32>
    %247 = arith.cmpi sge, %2, %246 : vector<1x256xi32>
    %248 = vector.broadcast %239 : i32 to vector<1x256xi32>
    %249 = arith.cmpi slt, %2, %248 : vector<1x256xi32>
    %250 = arith.andi %247, %249 : vector<1x256xi1>
    %251 = vector.broadcast %241 : i32 to vector<1x256xi32>
    %252 = arith.cmpi sge, %4, %251 : vector<1x256xi32>
    %253 = arith.andi %250, %252 : vector<1x256xi1>
    %254 = vector.broadcast %245 : i32 to vector<1x256xi32>
    %255 = arith.cmpi slt, %4, %254 : vector<1x256xi32>
    %256 = arith.andi %253, %255 : vector<1x256xi1>
    %257 = vector.broadcast %229 : i32 to vector<1x256xi32>
    %258 = arith.subi %2, %257 : vector<1x256xi32>
    %c3_i32_96 = arith.constant 3 : i32
    %259 = vector.broadcast %c3_i32_96 : i32 to vector<1x256xi32>
    %260 = arith.addi %258, %259 : vector<1x256xi32>
    %261 = arith.sitofp %260 : vector<1x256xi32> to vector<1x256xf32>
    %cst_97 = arith.constant 1.000000e+00 : f32
    %262 = vector.broadcast %cst_97 : f32 to vector<1x256xf32>
    %263 = arith.addf %261, %262 : vector<1x256xf32>
    %cst_98 = arith.constant 4.000000e+00 : f32
    %264 = vector.broadcast %cst_98 : f32 to vector<1x256xf32>
    %265 = arith.subf %263, %264 : vector<1x256xf32>
    %cst_99 = arith.constant 0.571428597 : f32
    %266 = vector.broadcast %cst_99 : f32 to vector<1x256xf32>
    %267 = arith.mulf %265, %266 : vector<1x256xf32>
    %268 = vector.broadcast %233 : i32 to vector<1x256xi32>
    %269 = arith.subi %4, %268 : vector<1x256xi32>
    %c3_i32_100 = arith.constant 3 : i32
    %270 = vector.broadcast %c3_i32_100 : i32 to vector<1x256xi32>
    %271 = arith.addi %269, %270 : vector<1x256xi32>
    %272 = arith.sitofp %271 : vector<1x256xi32> to vector<1x256xf32>
    %cst_101 = arith.constant 1.000000e+00 : f32
    %273 = vector.broadcast %cst_101 : f32 to vector<1x256xf32>
    %274 = arith.addf %272, %273 : vector<1x256xf32>
    %cst_102 = arith.constant 4.000000e+00 : f32
    %275 = vector.broadcast %cst_102 : f32 to vector<1x256xf32>
    %276 = arith.subf %274, %275 : vector<1x256xf32>
    %cst_103 = arith.constant 0.571428597 : f32
    %277 = vector.broadcast %cst_103 : f32 to vector<1x256xf32>
    %278 = arith.mulf %276, %277 : vector<1x256xf32>
    %279 = arith.mulf %267, %267 : vector<1x256xf32>
    %280 = arith.mulf %278, %278 : vector<1x256xf32>
    %281 = arith.addf %279, %280 : vector<1x256xf32>
    %cst_104 = arith.constant -5.000000e-01 : f32
    %282 = vector.broadcast %cst_104 : f32 to vector<1x256xf32>
    %283 = arith.mulf %282, %281 : vector<1x256xf32>
    %284 = math.exp %283 : vector<1x256xf32>
    %cst_105 = arith.constant 0.000000e+00 : f32
    %285 = vector.broadcast %cst_105 : f32 to vector<1x256xf32>
    %286 = arith.select %256, %284, %285 : vector<1x256xi1>, vector<1x256xf32>
    %c0_i32_106 = arith.constant 0 : i32
    %287 = arith.addi %c0_i32_106, %226 : i32
    %288 = arith.index_cast %287 : i32 to index
    %289 = memref.load %arg2[%288] : memref<32xi32, #tpu.memory_space<smem>>
    %c0_i32_107 = arith.constant 0 : i32
    %290 = arith.subi %289, %c0_i32_107 : i32
    %c0_i32_108 = arith.constant 0 : i32
    %291 = arith.maxsi %290, %c0_i32_108 : i32
    %c0_i32_109 = arith.constant 0 : i32
    %292 = arith.addi %289, %c0_i32_109 : i32
    %c1_i32_110 = arith.constant 1 : i32
    %293 = arith.addi %292, %c1_i32_110 : i32
    %c0_i32_111 = arith.constant 0 : i32
    %c2_i32_112 = arith.constant 2 : i32
    %294 = arith.maxsi %c0_i32_111, %293 : i32
    %295 = arith.minsi %c2_i32_112, %294 : i32
    %296 = vector.broadcast %291 : i32 to vector<2x1xi32>
    %297 = arith.cmpi sge, %5, %296 : vector<2x1xi32>
    %298 = vector.broadcast %295 : i32 to vector<2x1xi32>
    %299 = arith.cmpi slt, %5, %298 : vector<2x1xi32>
    %300 = arith.andi %297, %299 : vector<2x1xi1>
    %301 = vector.broadcast %289 : i32 to vector<2x1xi32>
    %302 = arith.subi %5, %301 : vector<2x1xi32>
    %c0_i32_113 = arith.constant 0 : i32
    %303 = vector.broadcast %c0_i32_113 : i32 to vector<2x1xi32>
    %304 = arith.addi %302, %303 : vector<2x1xi32>
    %305 = arith.sitofp %304 : vector<2x1xi32> to vector<2x1xf32>
    %cst_114 = arith.constant 1.000000e+00 : f32
    %306 = vector.broadcast %cst_114 : f32 to vector<2x1xf32>
    %307 = arith.addf %305, %306 : vector<2x1xf32>
    %cst_115 = arith.constant 1.000000e+00 : f32
    %308 = vector.broadcast %cst_115 : f32 to vector<2x1xf32>
    %309 = arith.subf %307, %308 : vector<2x1xf32>
    %cst_116 = arith.constant 4.000000e+00 : f32
    %310 = vector.broadcast %cst_116 : f32 to vector<2x1xf32>
    %311 = arith.mulf %309, %310 : vector<2x1xf32>
    %312 = arith.mulf %311, %311 : vector<2x1xf32>
    %cst_117 = arith.constant -5.000000e-01 : f32
    %313 = vector.broadcast %cst_117 : f32 to vector<2x1xf32>
    %314 = arith.mulf %313, %312 : vector<2x1xf32>
    %315 = math.exp %314 : vector<2x1xf32>
    %cst_118 = arith.constant 0.000000e+00 : f32
    %316 = vector.broadcast %cst_118 : f32 to vector<2x1xf32>
    %317 = arith.select %300, %315, %316 : vector<2x1xi1>, vector<2x1xf32>
    %318 = vector.broadcast %317 : vector<2x1xf32> to vector<2x256xf32>
    %319 = vector.broadcast %286 : vector<1x256xf32> to vector<2x256xf32>
    %320 = arith.mulf %318, %319 : vector<2x256xf32>
    %321 = arith.index_cast %c1_i32_78 : i32 to index
    %c0_119 = arith.constant 0 : index
    %c0_120 = arith.constant 0 : index
    %322 = vector.load %arg3[%321, %c0_119, %c0_120] : memref<4x2x256xf32, #tpu.memory_space<vmem>>, vector<1x2x256xf32>
    %323 = vector.shape_cast %322 : vector<1x2x256xf32> to vector<2x256xf32>
    %324 = vector.shape_cast %320 : vector<2x256xf32> to vector<1x2x256xf32>
    tpu.vector_store %arg3[%321, %c0_119, %c0_120], %324 {strides = array<i32>} : memref<4x2x256xf32, #tpu.memory_space<vmem>>, vector<1x2x256xf32>,
    %c8_i32_121 = arith.constant 8 : i32
    %325 = arith.addi %c8_i32_121, %226 : i32
    %326 = arith.index_cast %325 : i32 to index
    %327 = memref.load %arg2[%326] : memref<32xi32, #tpu.memory_space<smem>>
    %c1_i32_122 = arith.constant 1 : i32
    %328 = arith.subi %327, %c1_i32_122 : i32
    %c0_i32_123 = arith.constant 0 : i32
    %329 = arith.maxsi %328, %c0_i32_123 : i32
    %c1_i32_124 = arith.constant 1 : i32
    %330 = arith.addi %327, %c1_i32_124 : i32
    %c1_i32_125 = arith.constant 1 : i32
    %331 = arith.addi %330, %c1_i32_125 : i32
    %c0_i32_126 = arith.constant 0 : i32
    %c4_i32_127 = arith.constant 4 : i32
    %332 = arith.maxsi %c0_i32_126, %331 : i32
    %333 = arith.minsi %c4_i32_127, %332 : i32
    %334 = vector.broadcast %329 : i32 to vector<4x1xi32>
    %335 = arith.cmpi sge, %6, %334 : vector<4x1xi32>
    %336 = vector.broadcast %333 : i32 to vector<4x1xi32>
    %337 = arith.cmpi slt, %6, %336 : vector<4x1xi32>
    %338 = arith.andi %335, %337 : vector<4x1xi1>
    %339 = vector.broadcast %327 : i32 to vector<4x1xi32>
    %340 = arith.subi %6, %339 : vector<4x1xi32>
    %c1_i32_128 = arith.constant 1 : i32
    %341 = vector.broadcast %c1_i32_128 : i32 to vector<4x1xi32>
    %342 = arith.addi %340, %341 : vector<4x1xi32>
    %343 = arith.sitofp %342 : vector<4x1xi32> to vector<4x1xf32>
    %cst_129 = arith.constant 1.000000e+00 : f32
    %344 = vector.broadcast %cst_129 : f32 to vector<4x1xf32>
    %345 = arith.addf %343, %344 : vector<4x1xf32>
    %cst_130 = arith.constant 2.000000e+00 : f32
    %346 = vector.broadcast %cst_130 : f32 to vector<4x1xf32>
    %347 = arith.subf %345, %346 : vector<4x1xf32>
    %cst_131 = arith.constant 1.33333337 : f32
    %348 = vector.broadcast %cst_131 : f32 to vector<4x1xf32>
    %349 = arith.mulf %347, %348 : vector<4x1xf32>
    %350 = arith.mulf %349, %349 : vector<4x1xf32>
    %cst_132 = arith.constant -5.000000e-01 : f32
    %351 = vector.broadcast %cst_132 : f32 to vector<4x1xf32>
    %352 = arith.mulf %351, %350 : vector<4x1xf32>
    %353 = math.exp %352 : vector<4x1xf32>
    %cst_133 = arith.constant 0.000000e+00 : f32
    %354 = vector.broadcast %cst_133 : f32 to vector<4x1xf32>
    %355 = arith.select %338, %353, %354 : vector<4x1xi1>, vector<4x1xf32>
    %356 = vector.broadcast %355 : vector<4x1xf32> to vector<4x256xf32>
    %357 = vector.broadcast %286 : vector<1x256xf32> to vector<4x256xf32>
    %358 = arith.mulf %356, %357 : vector<4x256xf32>
    %359 = arith.index_cast %c1_i32_78 : i32 to index
    %c0_134 = arith.constant 0 : index
    %c0_135 = arith.constant 0 : index
    %360 = vector.load %arg4[%359, %c0_134, %c0_135] : memref<4x4x256xf32, #tpu.memory_space<vmem>>, vector<1x4x256xf32>
    %361 = vector.shape_cast %360 : vector<1x4x256xf32> to vector<4x256xf32>
    %362 = vector.shape_cast %358 : vector<4x256xf32> to vector<1x4x256xf32>
    tpu.vector_store %arg4[%359, %c0_134, %c0_135], %362 {strides = array<i32>} : memref<4x4x256xf32, #tpu.memory_space<vmem>>, vector<1x4x256xf32>,
    %c16_i32_136 = arith.constant 16 : i32
    %363 = arith.addi %c16_i32_136, %226 : i32
    %364 = arith.index_cast %363 : i32 to index
    %365 = memref.load %arg2[%364] : memref<32xi32, #tpu.memory_space<smem>>
    %c2_i32_137 = arith.constant 2 : i32
    %366 = arith.subi %365, %c2_i32_137 : i32
    %c0_i32_138 = arith.constant 0 : i32
    %367 = arith.maxsi %366, %c0_i32_138 : i32
    %c2_i32_139 = arith.constant 2 : i32
    %368 = arith.addi %365, %c2_i32_139 : i32
    %c1_i32_140 = arith.constant 1 : i32
    %369 = arith.addi %368, %c1_i32_140 : i32
    %c0_i32_141 = arith.constant 0 : i32
    %c8_i32_142 = arith.constant 8 : i32
    %370 = arith.maxsi %c0_i32_141, %369 : i32
    %371 = arith.minsi %c8_i32_142, %370 : i32
    %372 = vector.broadcast %367 : i32 to vector<8x1xi32>
    %373 = arith.cmpi sge, %7, %372 : vector<8x1xi32>
    %374 = vector.broadcast %371 : i32 to vector<8x1xi32>
    %375 = arith.cmpi slt, %7, %374 : vector<8x1xi32>
    %376 = arith.andi %373, %375 : vector<8x1xi1>
    %377 = vector.broadcast %365 : i32 to vector<8x1xi32>
    %378 = arith.subi %7, %377 : vector<8x1xi32>
    %c2_i32_143 = arith.constant 2 : i32
    %379 = vector.broadcast %c2_i32_143 : i32 to vector<8x1xi32>
    %380 = arith.addi %378, %379 : vector<8x1xi32>
    %381 = arith.sitofp %380 : vector<8x1xi32> to vector<8x1xf32>
    %cst_144 = arith.constant 1.000000e+00 : f32
    %382 = vector.broadcast %cst_144 : f32 to vector<8x1xf32>
    %383 = arith.addf %381, %382 : vector<8x1xf32>
    %cst_145 = arith.constant 3.000000e+00 : f32
    %384 = vector.broadcast %cst_145 : f32 to vector<8x1xf32>
    %385 = arith.subf %383, %384 : vector<8x1xf32>
    %cst_146 = arith.constant 8.000000e-01 : f32
    %386 = vector.broadcast %cst_146 : f32 to vector<8x1xf32>
    %387 = arith.mulf %385, %386 : vector<8x1xf32>
    %388 = arith.mulf %387, %387 : vector<8x1xf32>
    %cst_147 = arith.constant -5.000000e-01 : f32
    %389 = vector.broadcast %cst_147 : f32 to vector<8x1xf32>
    %390 = arith.mulf %389, %388 : vector<8x1xf32>
    %391 = math.exp %390 : vector<8x1xf32>
    %cst_148 = arith.constant 0.000000e+00 : f32
    %392 = vector.broadcast %cst_148 : f32 to vector<8x1xf32>
    %393 = arith.select %376, %391, %392 : vector<8x1xi1>, vector<8x1xf32>
    %394 = vector.broadcast %393 : vector<8x1xf32> to vector<8x256xf32>
    %395 = vector.broadcast %286 : vector<1x256xf32> to vector<8x256xf32>
    %396 = arith.mulf %394, %395 : vector<8x256xf32>
    %397 = arith.index_cast %c1_i32_78 : i32 to index
    %c0_149 = arith.constant 0 : index
    %c0_150 = arith.constant 0 : index
    %398 = vector.load %arg5[%397, %c0_149, %c0_150] : memref<4x8x256xf32, #tpu.memory_space<vmem>>, vector<1x8x256xf32>
    %399 = vector.shape_cast %398 : vector<1x8x256xf32> to vector<8x256xf32>
    %400 = vector.shape_cast %396 : vector<8x256xf32> to vector<1x8x256xf32>
    tpu.vector_store %arg5[%397, %c0_149, %c0_150], %400 {strides = array<i32>} : memref<4x8x256xf32, #tpu.memory_space<vmem>>, vector<1x8x256xf32>,
    %c24_i32_151 = arith.constant 24 : i32
    %401 = arith.addi %c24_i32_151, %226 : i32
    %402 = arith.index_cast %401 : i32 to index
    %403 = memref.load %arg2[%402] : memref<32xi32, #tpu.memory_space<smem>>
    %c3_i32_152 = arith.constant 3 : i32
    %404 = arith.subi %403, %c3_i32_152 : i32
    %c0_i32_153 = arith.constant 0 : i32
    %405 = arith.maxsi %404, %c0_i32_153 : i32
    %c3_i32_154 = arith.constant 3 : i32
    %406 = arith.addi %403, %c3_i32_154 : i32
    %c1_i32_155 = arith.constant 1 : i32
    %407 = arith.addi %406, %c1_i32_155 : i32
    %c0_i32_156 = arith.constant 0 : i32
    %c16_i32_157 = arith.constant 16 : i32
    %408 = arith.maxsi %c0_i32_156, %407 : i32
    %409 = arith.minsi %c16_i32_157, %408 : i32
    %410 = vector.broadcast %405 : i32 to vector<16x1xi32>
    %411 = arith.cmpi sge, %8, %410 : vector<16x1xi32>
    %412 = vector.broadcast %409 : i32 to vector<16x1xi32>
    %413 = arith.cmpi slt, %8, %412 : vector<16x1xi32>
    %414 = arith.andi %411, %413 : vector<16x1xi1>
    %415 = vector.broadcast %403 : i32 to vector<16x1xi32>
    %416 = arith.subi %8, %415 : vector<16x1xi32>
    %c3_i32_158 = arith.constant 3 : i32
    %417 = vector.broadcast %c3_i32_158 : i32 to vector<16x1xi32>
    %418 = arith.addi %416, %417 : vector<16x1xi32>
    %419 = arith.sitofp %418 : vector<16x1xi32> to vector<16x1xf32>
    %cst_159 = arith.constant 1.000000e+00 : f32
    %420 = vector.broadcast %cst_159 : f32 to vector<16x1xf32>
    %421 = arith.addf %419, %420 : vector<16x1xf32>
    %cst_160 = arith.constant 4.000000e+00 : f32
    %422 = vector.broadcast %cst_160 : f32 to vector<16x1xf32>
    %423 = arith.subf %421, %422 : vector<16x1xf32>
    %cst_161 = arith.constant 0.571428597 : f32
    %424 = vector.broadcast %cst_161 : f32 to vector<16x1xf32>
    %425 = arith.mulf %423, %424 : vector<16x1xf32>
    %426 = arith.mulf %425, %425 : vector<16x1xf32>
    %cst_162 = arith.constant -5.000000e-01 : f32
    %427 = vector.broadcast %cst_162 : f32 to vector<16x1xf32>
    %428 = arith.mulf %427, %426 : vector<16x1xf32>
    %429 = math.exp %428 : vector<16x1xf32>
    %cst_163 = arith.constant 0.000000e+00 : f32
    %430 = vector.broadcast %cst_163 : f32 to vector<16x1xf32>
    %431 = arith.select %414, %429, %430 : vector<16x1xi1>, vector<16x1xf32>
    %432 = vector.broadcast %431 : vector<16x1xf32> to vector<16x256xf32>
    %433 = vector.broadcast %286 : vector<1x256xf32> to vector<16x256xf32>
    %434 = arith.mulf %432, %433 : vector<16x256xf32>
    %435 = arith.index_cast %c1_i32_78 : i32 to index
    %c0_164 = arith.constant 0 : index
    %c0_165 = arith.constant 0 : index
    %436 = vector.load %arg6[%435, %c0_164, %c0_165] : memref<4x16x256xf32, #tpu.memory_space<vmem>>, vector<1x16x256xf32>
    %437 = vector.shape_cast %436 : vector<1x16x256xf32> to vector<16x256xf32>
    %438 = vector.shape_cast %434 : vector<16x256xf32> to vector<1x16x256xf32>
    tpu.vector_store %arg6[%435, %c0_164, %c0_165], %438 {strides = array<i32>} : memref<4x16x256xf32, #tpu.memory_space<vmem>>, vector<1x16x256xf32>,
    %c2_i32_166 = arith.constant 2 : i32
    %c4_i32_167 = arith.constant 4 : i32
    %439 = arith.muli %arg0, %c4_i32_167 : i32
    %440 = arith.addi %439, %c2_i32_166 : i32
    %c7_i32_168 = arith.constant 7 : i32
    %441 = arith.minsi %440, %c7_i32_168 : i32
    %c2_i32_169 = arith.constant 2 : i32
    %442 = arith.muli %c2_i32_169, %441 : i32
    %443 = arith.index_cast %442 : i32 to index
    %444 = memref.load %arg1[%443] : memref<16xi32, #tpu.memory_space<smem>>
    %c2_i32_170 = arith.constant 2 : i32
    %445 = arith.muli %c2_i32_170, %441 : i32
    %c1_i32_171 = arith.constant 1 : i32
    %446 = arith.addi %445, %c1_i32_171 : i32
    %447 = arith.index_cast %446 : i32 to index
    %448 = memref.load %arg1[%447] : memref<16xi32, #tpu.memory_space<smem>>
    %c3_i32_172 = arith.constant 3 : i32
    %449 = arith.subi %444, %c3_i32_172 : i32
    %c0_i32_173 = arith.constant 0 : i32
    %450 = arith.maxsi %449, %c0_i32_173 : i32
    %c3_i32_174 = arith.constant 3 : i32
    %451 = arith.addi %444, %c3_i32_174 : i32
    %c1_i32_175 = arith.constant 1 : i32
    %452 = arith.addi %451, %c1_i32_175 : i32
    %c0_i32_176 = arith.constant 0 : i32
    %c16_i32_177 = arith.constant 16 : i32
    %453 = arith.maxsi %c0_i32_176, %452 : i32
    %454 = arith.minsi %c16_i32_177, %453 : i32
    %c3_i32_178 = arith.constant 3 : i32
    %455 = arith.subi %448, %c3_i32_178 : i32
    %c0_i32_179 = arith.constant 0 : i32
    %456 = arith.maxsi %455, %c0_i32_179 : i32
    %c3_i32_180 = arith.constant 3 : i32
    %457 = arith.addi %448, %c3_i32_180 : i32
    %c1_i32_181 = arith.constant 1 : i32
    %458 = arith.addi %457, %c1_i32_181 : i32
    %c0_i32_182 = arith.constant 0 : i32
    %c16_i32_183 = arith.constant 16 : i32
    %459 = arith.maxsi %c0_i32_182, %458 : i32
    %460 = arith.minsi %c16_i32_183, %459 : i32
    %461 = vector.broadcast %450 : i32 to vector<1x256xi32>
    %462 = arith.cmpi sge, %2, %461 : vector<1x256xi32>
    %463 = vector.broadcast %454 : i32 to vector<1x256xi32>
    %464 = arith.cmpi slt, %2, %463 : vector<1x256xi32>
    %465 = arith.andi %462, %464 : vector<1x256xi1>
    %466 = vector.broadcast %456 : i32 to vector<1x256xi32>
    %467 = arith.cmpi sge, %4, %466 : vector<1x256xi32>
    %468 = arith.andi %465, %467 : vector<1x256xi1>
    %469 = vector.broadcast %460 : i32 to vector<1x256xi32>
    %470 = arith.cmpi slt, %4, %469 : vector<1x256xi32>
    %471 = arith.andi %468, %470 : vector<1x256xi1>
    %472 = vector.broadcast %444 : i32 to vector<1x256xi32>
    %473 = arith.subi %2, %472 : vector<1x256xi32>
    %c3_i32_184 = arith.constant 3 : i32
    %474 = vector.broadcast %c3_i32_184 : i32 to vector<1x256xi32>
    %475 = arith.addi %473, %474 : vector<1x256xi32>
    %476 = arith.sitofp %475 : vector<1x256xi32> to vector<1x256xf32>
    %cst_185 = arith.constant 1.000000e+00 : f32
    %477 = vector.broadcast %cst_185 : f32 to vector<1x256xf32>
    %478 = arith.addf %476, %477 : vector<1x256xf32>
    %cst_186 = arith.constant 4.000000e+00 : f32
    %479 = vector.broadcast %cst_186 : f32 to vector<1x256xf32>
    %480 = arith.subf %478, %479 : vector<1x256xf32>
    %cst_187 = arith.constant 0.571428597 : f32
    %481 = vector.broadcast %cst_187 : f32 to vector<1x256xf32>
    %482 = arith.mulf %480, %481 : vector<1x256xf32>
    %483 = vector.broadcast %448 : i32 to vector<1x256xi32>
    %484 = arith.subi %4, %483 : vector<1x256xi32>
    %c3_i32_188 = arith.constant 3 : i32
    %485 = vector.broadcast %c3_i32_188 : i32 to vector<1x256xi32>
    %486 = arith.addi %484, %485 : vector<1x256xi32>
    %487 = arith.sitofp %486 : vector<1x256xi32> to vector<1x256xf32>
    %cst_189 = arith.constant 1.000000e+00 : f32
    %488 = vector.broadcast %cst_189 : f32 to vector<1x256xf32>
    %489 = arith.addf %487, %488 : vector<1x256xf32>
    %cst_190 = arith.constant 4.000000e+00 : f32
    %490 = vector.broadcast %cst_190 : f32 to vector<1x256xf32>
    %491 = arith.subf %489, %490 : vector<1x256xf32>
    %cst_191 = arith.constant 0.571428597 : f32
    %492 = vector.broadcast %cst_191 : f32 to vector<1x256xf32>
    %493 = arith.mulf %491, %492 : vector<1x256xf32>
    %494 = arith.mulf %482, %482 : vector<1x256xf32>
    %495 = arith.mulf %493, %493 : vector<1x256xf32>
    %496 = arith.addf %494, %495 : vector<1x256xf32>
    %cst_192 = arith.constant -5.000000e-01 : f32
    %497 = vector.broadcast %cst_192 : f32 to vector<1x256xf32>
    %498 = arith.mulf %497, %496 : vector<1x256xf32>
    %499 = math.exp %498 : vector<1x256xf32>
    %cst_193 = arith.constant 0.000000e+00 : f32
    %500 = vector.broadcast %cst_193 : f32 to vector<1x256xf32>
    %501 = arith.select %471, %499, %500 : vector<1x256xi1>, vector<1x256xf32>
    %c0_i32_194 = arith.constant 0 : i32
    %502 = arith.addi %c0_i32_194, %441 : i32
    %503 = arith.index_cast %502 : i32 to index
    %504 = memref.load %arg2[%503] : memref<32xi32, #tpu.memory_space<smem>>
    %c0_i32_195 = arith.constant 0 : i32
    %505 = arith.subi %504, %c0_i32_195 : i32
    %c0_i32_196 = arith.constant 0 : i32
    %506 = arith.maxsi %505, %c0_i32_196 : i32
    %c0_i32_197 = arith.constant 0 : i32
    %507 = arith.addi %504, %c0_i32_197 : i32
    %c1_i32_198 = arith.constant 1 : i32
    %508 = arith.addi %507, %c1_i32_198 : i32
    %c0_i32_199 = arith.constant 0 : i32
    %c2_i32_200 = arith.constant 2 : i32
    %509 = arith.maxsi %c0_i32_199, %508 : i32
    %510 = arith.minsi %c2_i32_200, %509 : i32
    %511 = vector.broadcast %506 : i32 to vector<2x1xi32>
    %512 = arith.cmpi sge, %5, %511 : vector<2x1xi32>
    %513 = vector.broadcast %510 : i32 to vector<2x1xi32>
    %514 = arith.cmpi slt, %5, %513 : vector<2x1xi32>
    %515 = arith.andi %512, %514 : vector<2x1xi1>
    %516 = vector.broadcast %504 : i32 to vector<2x1xi32>
    %517 = arith.subi %5, %516 : vector<2x1xi32>
    %c0_i32_201 = arith.constant 0 : i32
    %518 = vector.broadcast %c0_i32_201 : i32 to vector<2x1xi32>
    %519 = arith.addi %517, %518 : vector<2x1xi32>
    %520 = arith.sitofp %519 : vector<2x1xi32> to vector<2x1xf32>
    %cst_202 = arith.constant 1.000000e+00 : f32
    %521 = vector.broadcast %cst_202 : f32 to vector<2x1xf32>
    %522 = arith.addf %520, %521 : vector<2x1xf32>
    %cst_203 = arith.constant 1.000000e+00 : f32
    %523 = vector.broadcast %cst_203 : f32 to vector<2x1xf32>
    %524 = arith.subf %522, %523 : vector<2x1xf32>
    %cst_204 = arith.constant 4.000000e+00 : f32
    %525 = vector.broadcast %cst_204 : f32 to vector<2x1xf32>
    %526 = arith.mulf %524, %525 : vector<2x1xf32>
    %527 = arith.mulf %526, %526 : vector<2x1xf32>
    %cst_205 = arith.constant -5.000000e-01 : f32
    %528 = vector.broadcast %cst_205 : f32 to vector<2x1xf32>
    %529 = arith.mulf %528, %527 : vector<2x1xf32>
    %530 = math.exp %529 : vector<2x1xf32>
    %cst_206 = arith.constant 0.000000e+00 : f32
    %531 = vector.broadcast %cst_206 : f32 to vector<2x1xf32>
    %532 = arith.select %515, %530, %531 : vector<2x1xi1>, vector<2x1xf32>
    %533 = vector.broadcast %532 : vector<2x1xf32> to vector<2x256xf32>
    %534 = vector.broadcast %501 : vector<1x256xf32> to vector<2x256xf32>
    %535 = arith.mulf %533, %534 : vector<2x256xf32>
    %536 = arith.index_cast %c2_i32_166 : i32 to index
    %c0_207 = arith.constant 0 : index
    %c0_208 = arith.constant 0 : index
    %537 = vector.load %arg3[%536, %c0_207, %c0_208] : memref<4x2x256xf32, #tpu.memory_space<vmem>>, vector<1x2x256xf32>
    %538 = vector.shape_cast %537 : vector<1x2x256xf32> to vector<2x256xf32>
    %539 = vector.shape_cast %535 : vector<2x256xf32> to vector<1x2x256xf32>
    tpu.vector_store %arg3[%536, %c0_207, %c0_208], %539 {strides = array<i32>} : memref<4x2x256xf32, #tpu.memory_space<vmem>>, vector<1x2x256xf32>,
    %c8_i32_209 = arith.constant 8 : i32
    %540 = arith.addi %c8_i32_209, %441 : i32
    %541 = arith.index_cast %540 : i32 to index
    %542 = memref.load %arg2[%541] : memref<32xi32, #tpu.memory_space<smem>>
    %c1_i32_210 = arith.constant 1 : i32
    %543 = arith.subi %542, %c1_i32_210 : i32
    %c0_i32_211 = arith.constant 0 : i32
    %544 = arith.maxsi %543, %c0_i32_211 : i32
    %c1_i32_212 = arith.constant 1 : i32
    %545 = arith.addi %542, %c1_i32_212 : i32
    %c1_i32_213 = arith.constant 1 : i32
    %546 = arith.addi %545, %c1_i32_213 : i32
    %c0_i32_214 = arith.constant 0 : i32
    %c4_i32_215 = arith.constant 4 : i32
    %547 = arith.maxsi %c0_i32_214, %546 : i32
    %548 = arith.minsi %c4_i32_215, %547 : i32
    %549 = vector.broadcast %544 : i32 to vector<4x1xi32>
    %550 = arith.cmpi sge, %6, %549 : vector<4x1xi32>
    %551 = vector.broadcast %548 : i32 to vector<4x1xi32>
    %552 = arith.cmpi slt, %6, %551 : vector<4x1xi32>
    %553 = arith.andi %550, %552 : vector<4x1xi1>
    %554 = vector.broadcast %542 : i32 to vector<4x1xi32>
    %555 = arith.subi %6, %554 : vector<4x1xi32>
    %c1_i32_216 = arith.constant 1 : i32
    %556 = vector.broadcast %c1_i32_216 : i32 to vector<4x1xi32>
    %557 = arith.addi %555, %556 : vector<4x1xi32>
    %558 = arith.sitofp %557 : vector<4x1xi32> to vector<4x1xf32>
    %cst_217 = arith.constant 1.000000e+00 : f32
    %559 = vector.broadcast %cst_217 : f32 to vector<4x1xf32>
    %560 = arith.addf %558, %559 : vector<4x1xf32>
    %cst_218 = arith.constant 2.000000e+00 : f32
    %561 = vector.broadcast %cst_218 : f32 to vector<4x1xf32>
    %562 = arith.subf %560, %561 : vector<4x1xf32>
    %cst_219 = arith.constant 1.33333337 : f32
    %563 = vector.broadcast %cst_219 : f32 to vector<4x1xf32>
    %564 = arith.mulf %562, %563 : vector<4x1xf32>
    %565 = arith.mulf %564, %564 : vector<4x1xf32>
    %cst_220 = arith.constant -5.000000e-01 : f32
    %566 = vector.broadcast %cst_220 : f32 to vector<4x1xf32>
    %567 = arith.mulf %566, %565 : vector<4x1xf32>
    %568 = math.exp %567 : vector<4x1xf32>
    %cst_221 = arith.constant 0.000000e+00 : f32
    %569 = vector.broadcast %cst_221 : f32 to vector<4x1xf32>
    %570 = arith.select %553, %568, %569 : vector<4x1xi1>, vector<4x1xf32>
    %571 = vector.broadcast %570 : vector<4x1xf32> to vector<4x256xf32>
    %572 = vector.broadcast %501 : vector<1x256xf32> to vector<4x256xf32>
    %573 = arith.mulf %571, %572 : vector<4x256xf32>
    %574 = arith.index_cast %c2_i32_166 : i32 to index
    %c0_222 = arith.constant 0 : index
    %c0_223 = arith.constant 0 : index
    %575 = vector.load %arg4[%574, %c0_222, %c0_223] : memref<4x4x256xf32, #tpu.memory_space<vmem>>, vector<1x4x256xf32>
    %576 = vector.shape_cast %575 : vector<1x4x256xf32> to vector<4x256xf32>
    %577 = vector.shape_cast %573 : vector<4x256xf32> to vector<1x4x256xf32>
    tpu.vector_store %arg4[%574, %c0_222, %c0_223], %577 {strides = array<i32>} : memref<4x4x256xf32, #tpu.memory_space<vmem>>, vector<1x4x256xf32>,
    %c16_i32_224 = arith.constant 16 : i32
    %578 = arith.addi %c16_i32_224, %441 : i32
    %579 = arith.index_cast %578 : i32 to index
    %580 = memref.load %arg2[%579] : memref<32xi32, #tpu.memory_space<smem>>
    %c2_i32_225 = arith.constant 2 : i32
    %581 = arith.subi %580, %c2_i32_225 : i32
    %c0_i32_226 = arith.constant 0 : i32
    %582 = arith.maxsi %581, %c0_i32_226 : i32
    %c2_i32_227 = arith.constant 2 : i32
    %583 = arith.addi %580, %c2_i32_227 : i32
    %c1_i32_228 = arith.constant 1 : i32
    %584 = arith.addi %583, %c1_i32_228 : i32
    %c0_i32_229 = arith.constant 0 : i32
    %c8_i32_230 = arith.constant 8 : i32
    %585 = arith.maxsi %c0_i32_229, %584 : i32
    %586 = arith.minsi %c8_i32_230, %585 : i32
    %587 = vector.broadcast %582 : i32 to vector<8x1xi32>
    %588 = arith.cmpi sge, %7, %587 : vector<8x1xi32>
    %589 = vector.broadcast %586 : i32 to vector<8x1xi32>
    %590 = arith.cmpi slt, %7, %589 : vector<8x1xi32>
    %591 = arith.andi %588, %590 : vector<8x1xi1>
    %592 = vector.broadcast %580 : i32 to vector<8x1xi32>
    %593 = arith.subi %7, %592 : vector<8x1xi32>
    %c2_i32_231 = arith.constant 2 : i32
    %594 = vector.broadcast %c2_i32_231 : i32 to vector<8x1xi32>
    %595 = arith.addi %593, %594 : vector<8x1xi32>
    %596 = arith.sitofp %595 : vector<8x1xi32> to vector<8x1xf32>
    %cst_232 = arith.constant 1.000000e+00 : f32
    %597 = vector.broadcast %cst_232 : f32 to vector<8x1xf32>
    %598 = arith.addf %596, %597 : vector<8x1xf32>
    %cst_233 = arith.constant 3.000000e+00 : f32
    %599 = vector.broadcast %cst_233 : f32 to vector<8x1xf32>
    %600 = arith.subf %598, %599 : vector<8x1xf32>
    %cst_234 = arith.constant 8.000000e-01 : f32
    %601 = vector.broadcast %cst_234 : f32 to vector<8x1xf32>
    %602 = arith.mulf %600, %601 : vector<8x1xf32>
    %603 = arith.mulf %602, %602 : vector<8x1xf32>
    %cst_235 = arith.constant -5.000000e-01 : f32
    %604 = vector.broadcast %cst_235 : f32 to vector<8x1xf32>
    %605 = arith.mulf %604, %603 : vector<8x1xf32>
    %606 = math.exp %605 : vector<8x1xf32>
    %cst_236 = arith.constant 0.000000e+00 : f32
    %607 = vector.broadcast %cst_236 : f32 to vector<8x1xf32>
    %608 = arith.select %591, %606, %607 : vector<8x1xi1>, vector<8x1xf32>
    %609 = vector.broadcast %608 : vector<8x1xf32> to vector<8x256xf32>
    %610 = vector.broadcast %501 : vector<1x256xf32> to vector<8x256xf32>
    %611 = arith.mulf %609, %610 : vector<8x256xf32>
    %612 = arith.index_cast %c2_i32_166 : i32 to index
    %c0_237 = arith.constant 0 : index
    %c0_238 = arith.constant 0 : index
    %613 = vector.load %arg5[%612, %c0_237, %c0_238] : memref<4x8x256xf32, #tpu.memory_space<vmem>>, vector<1x8x256xf32>
    %614 = vector.shape_cast %613 : vector<1x8x256xf32> to vector<8x256xf32>
    %615 = vector.shape_cast %611 : vector<8x256xf32> to vector<1x8x256xf32>
    tpu.vector_store %arg5[%612, %c0_237, %c0_238], %615 {strides = array<i32>} : memref<4x8x256xf32, #tpu.memory_space<vmem>>, vector<1x8x256xf32>,
    %c24_i32_239 = arith.constant 24 : i32
    %616 = arith.addi %c24_i32_239, %441 : i32
    %617 = arith.index_cast %616 : i32 to index
    %618 = memref.load %arg2[%617] : memref<32xi32, #tpu.memory_space<smem>>
    %c3_i32_240 = arith.constant 3 : i32
    %619 = arith.subi %618, %c3_i32_240 : i32
    %c0_i32_241 = arith.constant 0 : i32
    %620 = arith.maxsi %619, %c0_i32_241 : i32
    %c3_i32_242 = arith.constant 3 : i32
    %621 = arith.addi %618, %c3_i32_242 : i32
    %c1_i32_243 = arith.constant 1 : i32
    %622 = arith.addi %621, %c1_i32_243 : i32
    %c0_i32_244 = arith.constant 0 : i32
    %c16_i32_245 = arith.constant 16 : i32
    %623 = arith.maxsi %c0_i32_244, %622 : i32
    %624 = arith.minsi %c16_i32_245, %623 : i32
    %625 = vector.broadcast %620 : i32 to vector<16x1xi32>
    %626 = arith.cmpi sge, %8, %625 : vector<16x1xi32>
    %627 = vector.broadcast %624 : i32 to vector<16x1xi32>
    %628 = arith.cmpi slt, %8, %627 : vector<16x1xi32>
    %629 = arith.andi %626, %628 : vector<16x1xi1>
    %630 = vector.broadcast %618 : i32 to vector<16x1xi32>
    %631 = arith.subi %8, %630 : vector<16x1xi32>
    %c3_i32_246 = arith.constant 3 : i32
    %632 = vector.broadcast %c3_i32_246 : i32 to vector<16x1xi32>
    %633 = arith.addi %631, %632 : vector<16x1xi32>
    %634 = arith.sitofp %633 : vector<16x1xi32> to vector<16x1xf32>
    %cst_247 = arith.constant 1.000000e+00 : f32
    %635 = vector.broadcast %cst_247 : f32 to vector<16x1xf32>
    %636 = arith.addf %634, %635 : vector<16x1xf32>
    %cst_248 = arith.constant 4.000000e+00 : f32
    %637 = vector.broadcast %cst_248 : f32 to vector<16x1xf32>
    %638 = arith.subf %636, %637 : vector<16x1xf32>
    %cst_249 = arith.constant 0.571428597 : f32
    %639 = vector.broadcast %cst_249 : f32 to vector<16x1xf32>
    %640 = arith.mulf %638, %639 : vector<16x1xf32>
    %641 = arith.mulf %640, %640 : vector<16x1xf32>
    %cst_250 = arith.constant -5.000000e-01 : f32
    %642 = vector.broadcast %cst_250 : f32 to vector<16x1xf32>
    %643 = arith.mulf %642, %641 : vector<16x1xf32>
    %644 = math.exp %643 : vector<16x1xf32>
    %cst_251 = arith.constant 0.000000e+00 : f32
    %645 = vector.broadcast %cst_251 : f32 to vector<16x1xf32>
    %646 = arith.select %629, %644, %645 : vector<16x1xi1>, vector<16x1xf32>
    %647 = vector.broadcast %646 : vector<16x1xf32> to vector<16x256xf32>
    %648 = vector.broadcast %501 : vector<1x256xf32> to vector<16x256xf32>
    %649 = arith.mulf %647, %648 : vector<16x256xf32>
    %650 = arith.index_cast %c2_i32_166 : i32 to index
    %c0_252 = arith.constant 0 : index
    %c0_253 = arith.constant 0 : index
    %651 = vector.load %arg6[%650, %c0_252, %c0_253] : memref<4x16x256xf32, #tpu.memory_space<vmem>>, vector<1x16x256xf32>
    %652 = vector.shape_cast %651 : vector<1x16x256xf32> to vector<16x256xf32>
    %653 = vector.shape_cast %649 : vector<16x256xf32> to vector<1x16x256xf32>
    tpu.vector_store %arg6[%650, %c0_252, %c0_253], %653 {strides = array<i32>} : memref<4x16x256xf32, #tpu.memory_space<vmem>>, vector<1x16x256xf32>,
    %c3_i32_254 = arith.constant 3 : i32
    %c4_i32_255 = arith.constant 4 : i32
    %654 = arith.muli %arg0, %c4_i32_255 : i32
    %655 = arith.addi %654, %c3_i32_254 : i32
    %c7_i32_256 = arith.constant 7 : i32
    %656 = arith.minsi %655, %c7_i32_256 : i32
    %c2_i32_257 = arith.constant 2 : i32
    %657 = arith.muli %c2_i32_257, %656 : i32
    %658 = arith.index_cast %657 : i32 to index
    %659 = memref.load %arg1[%658] : memref<16xi32, #tpu.memory_space<smem>>
    %c2_i32_258 = arith.constant 2 : i32
    %660 = arith.muli %c2_i32_258, %656 : i32
    %c1_i32_259 = arith.constant 1 : i32
    %661 = arith.addi %660, %c1_i32_259 : i32
    %662 = arith.index_cast %661 : i32 to index
    %663 = memref.load %arg1[%662] : memref<16xi32, #tpu.memory_space<smem>>
    %c3_i32_260 = arith.constant 3 : i32
    %664 = arith.subi %659, %c3_i32_260 : i32
    %c0_i32_261 = arith.constant 0 : i32
    %665 = arith.maxsi %664, %c0_i32_261 : i32
    %c3_i32_262 = arith.constant 3 : i32
    %666 = arith.addi %659, %c3_i32_262 : i32
    %c1_i32_263 = arith.constant 1 : i32
    %667 = arith.addi %666, %c1_i32_263 : i32
    %c0_i32_264 = arith.constant 0 : i32
    %c16_i32_265 = arith.constant 16 : i32
    %668 = arith.maxsi %c0_i32_264, %667 : i32
    %669 = arith.minsi %c16_i32_265, %668 : i32
    %c3_i32_266 = arith.constant 3 : i32
    %670 = arith.subi %663, %c3_i32_266 : i32
    %c0_i32_267 = arith.constant 0 : i32
    %671 = arith.maxsi %670, %c0_i32_267 : i32
    %c3_i32_268 = arith.constant 3 : i32
    %672 = arith.addi %663, %c3_i32_268 : i32
    %c1_i32_269 = arith.constant 1 : i32
    %673 = arith.addi %672, %c1_i32_269 : i32
    %c0_i32_270 = arith.constant 0 : i32
    %c16_i32_271 = arith.constant 16 : i32
    %674 = arith.maxsi %c0_i32_270, %673 : i32
    %675 = arith.minsi %c16_i32_271, %674 : i32
    %676 = vector.broadcast %665 : i32 to vector<1x256xi32>
    %677 = arith.cmpi sge, %2, %676 : vector<1x256xi32>
    %678 = vector.broadcast %669 : i32 to vector<1x256xi32>
    %679 = arith.cmpi slt, %2, %678 : vector<1x256xi32>
    %680 = arith.andi %677, %679 : vector<1x256xi1>
    %681 = vector.broadcast %671 : i32 to vector<1x256xi32>
    %682 = arith.cmpi sge, %4, %681 : vector<1x256xi32>
    %683 = arith.andi %680, %682 : vector<1x256xi1>
    %684 = vector.broadcast %675 : i32 to vector<1x256xi32>
    %685 = arith.cmpi slt, %4, %684 : vector<1x256xi32>
    %686 = arith.andi %683, %685 : vector<1x256xi1>
    %687 = vector.broadcast %659 : i32 to vector<1x256xi32>
    %688 = arith.subi %2, %687 : vector<1x256xi32>
    %c3_i32_272 = arith.constant 3 : i32
    %689 = vector.broadcast %c3_i32_272 : i32 to vector<1x256xi32>
    %690 = arith.addi %688, %689 : vector<1x256xi32>
    %691 = arith.sitofp %690 : vector<1x256xi32> to vector<1x256xf32>
    %cst_273 = arith.constant 1.000000e+00 : f32
    %692 = vector.broadcast %cst_273 : f32 to vector<1x256xf32>
    %693 = arith.addf %691, %692 : vector<1x256xf32>
    %cst_274 = arith.constant 4.000000e+00 : f32
    %694 = vector.broadcast %cst_274 : f32 to vector<1x256xf32>
    %695 = arith.subf %693, %694 : vector<1x256xf32>
    %cst_275 = arith.constant 0.571428597 : f32
    %696 = vector.broadcast %cst_275 : f32 to vector<1x256xf32>
    %697 = arith.mulf %695, %696 : vector<1x256xf32>
    %698 = vector.broadcast %663 : i32 to vector<1x256xi32>
    %699 = arith.subi %4, %698 : vector<1x256xi32>
    %c3_i32_276 = arith.constant 3 : i32
    %700 = vector.broadcast %c3_i32_276 : i32 to vector<1x256xi32>
    %701 = arith.addi %699, %700 : vector<1x256xi32>
    %702 = arith.sitofp %701 : vector<1x256xi32> to vector<1x256xf32>
    %cst_277 = arith.constant 1.000000e+00 : f32
    %703 = vector.broadcast %cst_277 : f32 to vector<1x256xf32>
    %704 = arith.addf %702, %703 : vector<1x256xf32>
    %cst_278 = arith.constant 4.000000e+00 : f32
    %705 = vector.broadcast %cst_278 : f32 to vector<1x256xf32>
    %706 = arith.subf %704, %705 : vector<1x256xf32>
    %cst_279 = arith.constant 0.571428597 : f32
    %707 = vector.broadcast %cst_279 : f32 to vector<1x256xf32>
    %708 = arith.mulf %706, %707 : vector<1x256xf32>
    %709 = arith.mulf %697, %697 : vector<1x256xf32>
    %710 = arith.mulf %708, %708 : vector<1x256xf32>
    %711 = arith.addf %709, %710 : vector<1x256xf32>
    %cst_280 = arith.constant -5.000000e-01 : f32
    %712 = vector.broadcast %cst_280 : f32 to vector<1x256xf32>
    %713 = arith.mulf %712, %711 : vector<1x256xf32>
    %714 = math.exp %713 : vector<1x256xf32>
    %cst_281 = arith.constant 0.000000e+00 : f32
    %715 = vector.broadcast %cst_281 : f32 to vector<1x256xf32>
    %716 = arith.select %686, %714, %715 : vector<1x256xi1>, vector<1x256xf32>
    %c0_i32_282 = arith.constant 0 : i32
    %717 = arith.addi %c0_i32_282, %656 : i32
    %718 = arith.index_cast %717 : i32 to index
    %719 = memref.load %arg2[%718] : memref<32xi32, #tpu.memory_space<smem>>
    %c0_i32_283 = arith.constant 0 : i32
    %720 = arith.subi %719, %c0_i32_283 : i32
    %c0_i32_284 = arith.constant 0 : i32
    %721 = arith.maxsi %720, %c0_i32_284 : i32
    %c0_i32_285 = arith.constant 0 : i32
    %722 = arith.addi %719, %c0_i32_285 : i32
    %c1_i32_286 = arith.constant 1 : i32
    %723 = arith.addi %722, %c1_i32_286 : i32
    %c0_i32_287 = arith.constant 0 : i32
    %c2_i32_288 = arith.constant 2 : i32
    %724 = arith.maxsi %c0_i32_287, %723 : i32
    %725 = arith.minsi %c2_i32_288, %724 : i32
    %726 = vector.broadcast %721 : i32 to vector<2x1xi32>
    %727 = arith.cmpi sge, %5, %726 : vector<2x1xi32>
    %728 = vector.broadcast %725 : i32 to vector<2x1xi32>
    %729 = arith.cmpi slt, %5, %728 : vector<2x1xi32>
    %730 = arith.andi %727, %729 : vector<2x1xi1>
    %731 = vector.broadcast %719 : i32 to vector<2x1xi32>
    %732 = arith.subi %5, %731 : vector<2x1xi32>
    %c0_i32_289 = arith.constant 0 : i32
    %733 = vector.broadcast %c0_i32_289 : i32 to vector<2x1xi32>
    %734 = arith.addi %732, %733 : vector<2x1xi32>
    %735 = arith.sitofp %734 : vector<2x1xi32> to vector<2x1xf32>
    %cst_290 = arith.constant 1.000000e+00 : f32
    %736 = vector.broadcast %cst_290 : f32 to vector<2x1xf32>
    %737 = arith.addf %735, %736 : vector<2x1xf32>
    %cst_291 = arith.constant 1.000000e+00 : f32
    %738 = vector.broadcast %cst_291 : f32 to vector<2x1xf32>
    %739 = arith.subf %737, %738 : vector<2x1xf32>
    %cst_292 = arith.constant 4.000000e+00 : f32
    %740 = vector.broadcast %cst_292 : f32 to vector<2x1xf32>
    %741 = arith.mulf %739, %740 : vector<2x1xf32>
    %742 = arith.mulf %741, %741 : vector<2x1xf32>
    %cst_293 = arith.constant -5.000000e-01 : f32
    %743 = vector.broadcast %cst_293 : f32 to vector<2x1xf32>
    %744 = arith.mulf %743, %742 : vector<2x1xf32>
    %745 = math.exp %744 : vector<2x1xf32>
    %cst_294 = arith.constant 0.000000e+00 : f32
    %746 = vector.broadcast %cst_294 : f32 to vector<2x1xf32>
    %747 = arith.select %730, %745, %746 : vector<2x1xi1>, vector<2x1xf32>
    %748 = vector.broadcast %747 : vector<2x1xf32> to vector<2x256xf32>
    %749 = vector.broadcast %716 : vector<1x256xf32> to vector<2x256xf32>
    %750 = arith.mulf %748, %749 : vector<2x256xf32>
    %751 = arith.index_cast %c3_i32_254 : i32 to index
    %c0_295 = arith.constant 0 : index
    %c0_296 = arith.constant 0 : index
    %752 = vector.load %arg3[%751, %c0_295, %c0_296] : memref<4x2x256xf32, #tpu.memory_space<vmem>>, vector<1x2x256xf32>
    %753 = vector.shape_cast %752 : vector<1x2x256xf32> to vector<2x256xf32>
    %754 = vector.shape_cast %750 : vector<2x256xf32> to vector<1x2x256xf32>
    tpu.vector_store %arg3[%751, %c0_295, %c0_296], %754 {strides = array<i32>} : memref<4x2x256xf32, #tpu.memory_space<vmem>>, vector<1x2x256xf32>,
    %c8_i32_297 = arith.constant 8 : i32
    %755 = arith.addi %c8_i32_297, %656 : i32
    %756 = arith.index_cast %755 : i32 to index
    %757 = memref.load %arg2[%756] : memref<32xi32, #tpu.memory_space<smem>>
    %c1_i32_298 = arith.constant 1 : i32
    %758 = arith.subi %757, %c1_i32_298 : i32
    %c0_i32_299 = arith.constant 0 : i32
    %759 = arith.maxsi %758, %c0_i32_299 : i32
    %c1_i32_300 = arith.constant 1 : i32
    %760 = arith.addi %757, %c1_i32_300 : i32
    %c1_i32_301 = arith.constant 1 : i32
    %761 = arith.addi %760, %c1_i32_301 : i32
    %c0_i32_302 = arith.constant 0 : i32
    %c4_i32_303 = arith.constant 4 : i32
    %762 = arith.maxsi %c0_i32_302, %761 : i32
    %763 = arith.minsi %c4_i32_303, %762 : i32
    %764 = vector.broadcast %759 : i32 to vector<4x1xi32>
    %765 = arith.cmpi sge, %6, %764 : vector<4x1xi32>
    %766 = vector.broadcast %763 : i32 to vector<4x1xi32>
    %767 = arith.cmpi slt, %6, %766 : vector<4x1xi32>
    %768 = arith.andi %765, %767 : vector<4x1xi1>
    %769 = vector.broadcast %757 : i32 to vector<4x1xi32>
    %770 = arith.subi %6, %769 : vector<4x1xi32>
    %c1_i32_304 = arith.constant 1 : i32
    %771 = vector.broadcast %c1_i32_304 : i32 to vector<4x1xi32>
    %772 = arith.addi %770, %771 : vector<4x1xi32>
    %773 = arith.sitofp %772 : vector<4x1xi32> to vector<4x1xf32>
    %cst_305 = arith.constant 1.000000e+00 : f32
    %774 = vector.broadcast %cst_305 : f32 to vector<4x1xf32>
    %775 = arith.addf %773, %774 : vector<4x1xf32>
    %cst_306 = arith.constant 2.000000e+00 : f32
    %776 = vector.broadcast %cst_306 : f32 to vector<4x1xf32>
    %777 = arith.subf %775, %776 : vector<4x1xf32>
    %cst_307 = arith.constant 1.33333337 : f32
    %778 = vector.broadcast %cst_307 : f32 to vector<4x1xf32>
    %779 = arith.mulf %777, %778 : vector<4x1xf32>
    %780 = arith.mulf %779, %779 : vector<4x1xf32>
    %cst_308 = arith.constant -5.000000e-01 : f32
    %781 = vector.broadcast %cst_308 : f32 to vector<4x1xf32>
    %782 = arith.mulf %781, %780 : vector<4x1xf32>
    %783 = math.exp %782 : vector<4x1xf32>
    %cst_309 = arith.constant 0.000000e+00 : f32
    %784 = vector.broadcast %cst_309 : f32 to vector<4x1xf32>
    %785 = arith.select %768, %783, %784 : vector<4x1xi1>, vector<4x1xf32>
    %786 = vector.broadcast %785 : vector<4x1xf32> to vector<4x256xf32>
    %787 = vector.broadcast %716 : vector<1x256xf32> to vector<4x256xf32>
    %788 = arith.mulf %786, %787 : vector<4x256xf32>
    %789 = arith.index_cast %c3_i32_254 : i32 to index
    %c0_310 = arith.constant 0 : index
    %c0_311 = arith.constant 0 : index
    %790 = vector.load %arg4[%789, %c0_310, %c0_311] : memref<4x4x256xf32, #tpu.memory_space<vmem>>, vector<1x4x256xf32>
    %791 = vector.shape_cast %790 : vector<1x4x256xf32> to vector<4x256xf32>
    %792 = vector.shape_cast %788 : vector<4x256xf32> to vector<1x4x256xf32>
    tpu.vector_store %arg4[%789, %c0_310, %c0_311], %792 {strides = array<i32>} : memref<4x4x256xf32, #tpu.memory_space<vmem>>, vector<1x4x256xf32>,
    %c16_i32_312 = arith.constant 16 : i32
    %793 = arith.addi %c16_i32_312, %656 : i32
    %794 = arith.index_cast %793 : i32 to index
    %795 = memref.load %arg2[%794] : memref<32xi32, #tpu.memory_space<smem>>
    %c2_i32_313 = arith.constant 2 : i32
    %796 = arith.subi %795, %c2_i32_313 : i32
    %c0_i32_314 = arith.constant 0 : i32
    %797 = arith.maxsi %796, %c0_i32_314 : i32
    %c2_i32_315 = arith.constant 2 : i32
    %798 = arith.addi %795, %c2_i32_315 : i32
    %c1_i32_316 = arith.constant 1 : i32
    %799 = arith.addi %798, %c1_i32_316 : i32
    %c0_i32_317 = arith.constant 0 : i32
    %c8_i32_318 = arith.constant 8 : i32
    %800 = arith.maxsi %c0_i32_317, %799 : i32
    %801 = arith.minsi %c8_i32_318, %800 : i32
    %802 = vector.broadcast %797 : i32 to vector<8x1xi32>
    %803 = arith.cmpi sge, %7, %802 : vector<8x1xi32>
    %804 = vector.broadcast %801 : i32 to vector<8x1xi32>
    %805 = arith.cmpi slt, %7, %804 : vector<8x1xi32>
    %806 = arith.andi %803, %805 : vector<8x1xi1>
    %807 = vector.broadcast %795 : i32 to vector<8x1xi32>
    %808 = arith.subi %7, %807 : vector<8x1xi32>
    %c2_i32_319 = arith.constant 2 : i32
    %809 = vector.broadcast %c2_i32_319 : i32 to vector<8x1xi32>
    %810 = arith.addi %808, %809 : vector<8x1xi32>
    %811 = arith.sitofp %810 : vector<8x1xi32> to vector<8x1xf32>
    %cst_320 = arith.constant 1.000000e+00 : f32
    %812 = vector.broadcast %cst_320 : f32 to vector<8x1xf32>
    %813 = arith.addf %811, %812 : vector<8x1xf32>
    %cst_321 = arith.constant 3.000000e+00 : f32
    %814 = vector.broadcast %cst_321 : f32 to vector<8x1xf32>
    %815 = arith.subf %813, %814 : vector<8x1xf32>
    %cst_322 = arith.constant 8.000000e-01 : f32
    %816 = vector.broadcast %cst_322 : f32 to vector<8x1xf32>
    %817 = arith.mulf %815, %816 : vector<8x1xf32>
    %818 = arith.mulf %817, %817 : vector<8x1xf32>
    %cst_323 = arith.constant -5.000000e-01 : f32
    %819 = vector.broadcast %cst_323 : f32 to vector<8x1xf32>
    %820 = arith.mulf %819, %818 : vector<8x1xf32>
    %821 = math.exp %820 : vector<8x1xf32>
    %cst_324 = arith.constant 0.000000e+00 : f32
    %822 = vector.broadcast %cst_324 : f32 to vector<8x1xf32>
    %823 = arith.select %806, %821, %822 : vector<8x1xi1>, vector<8x1xf32>
    %824 = vector.broadcast %823 : vector<8x1xf32> to vector<8x256xf32>
    %825 = vector.broadcast %716 : vector<1x256xf32> to vector<8x256xf32>
    %826 = arith.mulf %824, %825 : vector<8x256xf32>
    %827 = arith.index_cast %c3_i32_254 : i32 to index
    %c0_325 = arith.constant 0 : index
    %c0_326 = arith.constant 0 : index
    %828 = vector.load %arg5[%827, %c0_325, %c0_326] : memref<4x8x256xf32, #tpu.memory_space<vmem>>, vector<1x8x256xf32>
    %829 = vector.shape_cast %828 : vector<1x8x256xf32> to vector<8x256xf32>
    %830 = vector.shape_cast %826 : vector<8x256xf32> to vector<1x8x256xf32>
    tpu.vector_store %arg5[%827, %c0_325, %c0_326], %830 {strides = array<i32>} : memref<4x8x256xf32, #tpu.memory_space<vmem>>, vector<1x8x256xf32>,
    %c24_i32_327 = arith.constant 24 : i32
    %831 = arith.addi %c24_i32_327, %656 : i32
    %832 = arith.index_cast %831 : i32 to index
    %833 = memref.load %arg2[%832] : memref<32xi32, #tpu.memory_space<smem>>
    %c3_i32_328 = arith.constant 3 : i32
    %834 = arith.subi %833, %c3_i32_328 : i32
    %c0_i32_329 = arith.constant 0 : i32
    %835 = arith.maxsi %834, %c0_i32_329 : i32
    %c3_i32_330 = arith.constant 3 : i32
    %836 = arith.addi %833, %c3_i32_330 : i32
    %c1_i32_331 = arith.constant 1 : i32
    %837 = arith.addi %836, %c1_i32_331 : i32
    %c0_i32_332 = arith.constant 0 : i32
    %c16_i32_333 = arith.constant 16 : i32
    %838 = arith.maxsi %c0_i32_332, %837 : i32
    %839 = arith.minsi %c16_i32_333, %838 : i32
    %840 = vector.broadcast %835 : i32 to vector<16x1xi32>
    %841 = arith.cmpi sge, %8, %840 : vector<16x1xi32>
    %842 = vector.broadcast %839 : i32 to vector<16x1xi32>
    %843 = arith.cmpi slt, %8, %842 : vector<16x1xi32>
    %844 = arith.andi %841, %843 : vector<16x1xi1>
    %845 = vector.broadcast %833 : i32 to vector<16x1xi32>
    %846 = arith.subi %8, %845 : vector<16x1xi32>
    %c3_i32_334 = arith.constant 3 : i32
    %847 = vector.broadcast %c3_i32_334 : i32 to vector<16x1xi32>
    %848 = arith.addi %846, %847 : vector<16x1xi32>
    %849 = arith.sitofp %848 : vector<16x1xi32> to vector<16x1xf32>
    %cst_335 = arith.constant 1.000000e+00 : f32
    %850 = vector.broadcast %cst_335 : f32 to vector<16x1xf32>
    %851 = arith.addf %849, %850 : vector<16x1xf32>
    %cst_336 = arith.constant 4.000000e+00 : f32
    %852 = vector.broadcast %cst_336 : f32 to vector<16x1xf32>
    %853 = arith.subf %851, %852 : vector<16x1xf32>
    %cst_337 = arith.constant 0.571428597 : f32
    %854 = vector.broadcast %cst_337 : f32 to vector<16x1xf32>
    %855 = arith.mulf %853, %854 : vector<16x1xf32>
    %856 = arith.mulf %855, %855 : vector<16x1xf32>
    %cst_338 = arith.constant -5.000000e-01 : f32
    %857 = vector.broadcast %cst_338 : f32 to vector<16x1xf32>
    %858 = arith.mulf %857, %856 : vector<16x1xf32>
    %859 = math.exp %858 : vector<16x1xf32>
    %cst_339 = arith.constant 0.000000e+00 : f32
    %860 = vector.broadcast %cst_339 : f32 to vector<16x1xf32>
    %861 = arith.select %844, %859, %860 : vector<16x1xi1>, vector<16x1xf32>
    %862 = vector.broadcast %861 : vector<16x1xf32> to vector<16x256xf32>
    %863 = vector.broadcast %716 : vector<1x256xf32> to vector<16x256xf32>
    %864 = arith.mulf %862, %863 : vector<16x256xf32>
    %865 = arith.index_cast %c3_i32_254 : i32 to index
    %c0_340 = arith.constant 0 : index
    %c0_341 = arith.constant 0 : index
    %866 = vector.load %arg6[%865, %c0_340, %c0_341] : memref<4x16x256xf32, #tpu.memory_space<vmem>>, vector<1x16x256xf32>
    %867 = vector.shape_cast %866 : vector<1x16x256xf32> to vector<16x256xf32>
    %868 = vector.shape_cast %864 : vector<16x256xf32> to vector<1x16x256xf32>
    tpu.vector_store %arg6[%865, %c0_340, %c0_341], %868 {strides = array<i32>} : memref<4x16x256xf32, #tpu.memory_space<vmem>>, vector<1x16x256xf32>,
    %c4_i32_342 = arith.constant 4 : i32
    return
  }
  func.func @transform_0(%arg0: i32, %arg1: memref<16xi32, #tpu.memory_space<smem>>, %arg2: memref<32xi32, #tpu.memory_space<smem>>) -> (i32, i32, i32) {
    %c0_i32 = arith.constant 0 : i32
    %c0_i32_0 = arith.constant 0 : i32
    %c0_i32_1 = arith.constant 0 : i32
    return %arg0, %c0_i32, %c0_i32_0 : i32, i32, i32
  }
  func.func @transform_1(%arg0: i32, %arg1: memref<16xi32, #tpu.memory_space<smem>>, %arg2: memref<32xi32, #tpu.memory_space<smem>>) -> (i32, i32, i32) {
    %c0_i32 = arith.constant 0 : i32
    %c0_i32_0 = arith.constant 0 : i32
    %c0_i32_1 = arith.constant 0 : i32
    return %arg0, %c0_i32, %c0_i32_0 : i32, i32, i32
  }
  func.func @transform_2(%arg0: i32, %arg1: memref<16xi32, #tpu.memory_space<smem>>, %arg2: memref<32xi32, #tpu.memory_space<smem>>) -> (i32, i32, i32) {
    %c0_i32 = arith.constant 0 : i32
    %c0_i32_0 = arith.constant 0 : i32
    %c0_i32_1 = arith.constant 0 : i32
    return %arg0, %c0_i32, %c0_i32_0 : i32, i32, i32
  }
  func.func @transform_3(%arg0: i32, %arg1: memref<16xi32, #tpu.memory_space<smem>>, %arg2: memref<32xi32, #tpu.memory_space<smem>>) -> (i32, i32, i32) {
    %c0_i32 = arith.constant 0 : i32
    %c0_i32_0 = arith.constant 0 : i32
    %c0_i32_1 = arith.constant 0 : i32
    return %arg0, %c0_i32, %c0_i32_0 : i32, i32, i32
  }
}

</mosaic_0001>

<llo_original>
// kernel: tpu_custom_call.1
$region0: #{tpu_custom_call.1}
  #allocation0 [shape = 'u32[]', space=smem, size = 0x4, offset = 0x4, fixed_abs, tag = 'smem constant byte address 0x4 - core index']
  #allocation1 [shape = 'u32[144,128]{1,0:T(1,128)}', space=vmem, size = 0x12000, scoped, tag = 'internal scratch']
  #allocation2 [shape = 's32[1]{0}', space=sflag, size = 0x4, scoped, tag = 'scoped memory for tpu_custom_call.1']
  #allocation3 [shape = 'u8[512]{0}', space=smem, size = 0x200, scoped, tag = 'prefetched SMEM operand 0']
  #allocation4 [shape = 'u8[512]{0}', space=smem, size = 0x200, scoped, tag = 'prefetched SMEM operand 1']
  %s0 = inlined_call_operand.hbm [shape: s32[16], index: 0, kind: input, shape index: {}]
  %s1 = inlined_call_operand.vmem [shape: s32[32], index: 1, kind: input, shape index: {}]
  %s2 = inlined_call_operand.hbm [shape: f32[8,2,256], index: 2, kind: output, shape index: {0}]
  %s3 = inlined_call_operand.hbm [shape: f32[8,4,256], index: 3, kind: output, shape index: {1}]
  %s4 = inlined_call_operand.hbm [shape: f32[8,8,256], index: 4, kind: output, shape index: {2}]
  %s5 = inlined_call_operand.hbm [shape: f32[8,16,256], index: 5, kind: output, shape index: {3}]
  %6 = xla_tuple %s2, %s3, %s4, %s5
  %s7 = sld [smem:[#allocation0]]
  $region49: #{tpu_custom_call.1} parent=0
    _
  %s9 = ssub.s32 1, %s7
  %s10 = scalar_select 0, %s9, %s7
  %12 = dma.hbm_to_smem %s0, 16, [#allocation3], [#allocation2]
  %s13 = sshll.u32 %s1, 4
  %s14 = int_to_ptr.vmem [resolvable:$true] %s13
  %16 = dma.vmem_to_smem %s14, 16, [#allocation4], [#allocation2]
  %17 = dma.done [#allocation2], 32
  %18 = sfence
  $region1: #{tpu_custom_call.1} parent=0
    #allocation5 [shape = 'u8[16384]{0}', space=vmem, size = 0x4000, scoped, tag = 'output window, operand 0']
    #allocation6 [shape = 's32[2]{0}', space=sflag, size = 0x8, scoped, tag = 'scoped memory for tpu_custom_call.1']
    #allocation7 [shape = 'u8[32768]{0}', space=vmem, size = 0x8000, scoped, tag = 'output window, operand 1']
    #allocation8 [shape = 's32[2]{0}', space=sflag, size = 0x8, scoped, tag = 'scoped memory for tpu_custom_call.1']
    #allocation9 [shape = 'u8[65536]{0}', space=vmem, size = 0x10000, scoped, tag = 'output window, operand 2']
    #allocation10 [shape = 'u8[131072]{0}', space=vmem, size = 0x20000, scoped, tag = 'output window, operand 3']
    #allocation11 [shape = 's32[2]{0}', space=sflag, size = 0x8, scoped, tag = 'scoped memory for tpu_custom_call.1']
    %19 = vsyncpa [#allocation6], 0
    %s20 = scalar_lea.sflag [#allocation6], 1
    %21 = vsyncpa %s20, 0
    %22 = vsyncpa [#allocation8], 0
    %s23 = scalar_lea.sflag [#allocation8], 1
    %24 = vsyncpa %s23, 0
    %25 = vsyncpa [#allocation11], 0
    %s26 = scalar_lea.sflag [#allocation11], 1
    %27 = vsyncpa %s26, 0
    loop: start=0, step=1, limit=3
    $region2: #{tpu_custom_call.1} parent=1 // loop_pre_header
      _
    $region3: #{tpu_custom_call.1} parent=1 // loop_header
      %s29 = sphi 0, %s33
      %p30 = scmp.ge.s32.totalorder %s29, 3
      %s38 = sphi 0, %s40
      %s41 = sphi 0, %s38
      %s51 = sphi 0, %s41
      %s57 = sphi 0, %s59
      %s60 = sphi 0, %s57
      %s70 = sphi 0, %s60
      %s76 = sphi 0, %s78
      %s79 = sphi 0, %s76
      %s89 = sphi 0, %s79
      %s95 = sphi 0, %s97
      %s98 = sphi 0, %s95
      %s108 = sphi 0, %s98
    $region4: #{tpu_custom_call.1} parent=1 // loop_header_branch
      %32 = sbr.rel (%p30) target = $region8
    $region5: #{tpu_custom_call.1} parent=1 // loop_body
      %s34 = ssub.s32 %s29, 1
      %s35 = sadd.s32 %s29, 1
      %s36 = ssub.s32 %s29, %s35
      %p37 = scmp.eq.s32.totalorder %s36, 0
      %s39 = sadd.s32 %s38, 1
      %s40 = scalar_select %p37, %s38, %s39
      %p42 = pneg %p37
      %p43 = scmp.eq.s32.totalorder %s29, 1
      %p44 = por %p42, %p43
      %p45 = scmp.ne.s32.totalorder %s38, %s41
      %p46 = scmp.eq.s32.totalorder %s29, 0
      %p47 = por %p45, %p46
      %p48 = scmp.ne.s32.totalorder %s38, %s41
      %p49 = scmp.eq.s32.totalorder %s34, 1
      %p50 = por %p48, %p49
      %p52 = scmp.ne.s32.totalorder %s41, %s51
      %p53 = scmp.eq.s32.totalorder %s34, 0
      %p54 = por %p52, %p53
      %s55 = ssub.s32 %s29, %s35
      %p56 = scmp.eq.s32.totalorder %s55, 0
      %s58 = sadd.s32 %s57, 1
      %s59 = scalar_select %p56, %s57, %s58
      %p61 = pneg %p56
      %p62 = scmp.eq.s32.totalorder %s29, 1
      %p63 = por %p61, %p62
      %p64 = scmp.ne.s32.totalorder %s57, %s60
      %p65 = scmp.eq.s32.totalorder %s29, 0
      %p66 = por %p64, %p65
      %p67 = scmp.ne.s32.totalorder %s57, %s60
      %p68 = scmp.eq.s32.totalorder %s34, 1
      %p69 = por %p67, %p68
      %p71 = scmp.ne.s32.totalorder %s60, %s70
      %p72 = scmp.eq.s32.totalorder %s34, 0
      %p73 = por %p71, %p72
      %s74 = ssub.s32 %s29, %s35
      %p75 = scmp.eq.s32.totalorder %s74, 0
      %s77 = sadd.s32 %s76, 1
      %s78 = scalar_select %p75, %s76, %s77
      %p80 = pneg %p75
      %p81 = scmp.eq.s32.totalorder %s29, 1
      %p82 = por %p80, %p81
      %p83 = scmp.ne.s32.totalorder %s76, %s79
      %p84 = scmp.eq.s32.totalorder %s29, 0
      %p85 = por %p83, %p84
      %p86 = scmp.ne.s32.totalorder %s76, %s79
      %p87 = scmp.eq.s32.totalorder %s34, 1
      %p88 = por %p86, %p87
      %p90 = scmp.ne.s32.totalorder %s79, %s89
      %p91 = scmp.eq.s32.totalorder %s34, 0
      %p92 = por %p90, %p91
      %s93 = ssub.s32 %s29, %s35
      %p94 = scmp.eq.s32.totalorder %s93, 0
      %s96 = sadd.s32 %s95, 1
      %s97 = scalar_select %p94, %s95, %s96
      %p99 = pneg %p94
      %p100 = scmp.eq.s32.totalorder %s29, 1
      %p101 = por %p99, %p100
      %p102 = scmp.ne.s32.totalorder %s95, %s98
      %p103 = scmp.eq.s32.totalorder %s29, 0
      %p104 = por %p102, %p103
      %p105 = scmp.ne.s32.totalorder %s95, %s98
      %p106 = scmp.eq.s32.totalorder %s34, 1
      %p107 = por %p105, %p106
      %p109 = scmp.ne.s32.totalorder %s98, %s108
      %p110 = scmp.eq.s32.totalorder %s34, 0
      %p111 = por %p109, %p110
      %p112 = scmp.lt.s32.totalorder %s29, 2
      // Predicated region
      $region9: #{tpu_custom_call.1} parent=5 // pred_check
        %p113 = pneg %p112
      $region10: #{tpu_custom_call.1} parent=5 // pred_check_branch
        %115 = sbr.rel (%p113) target = $region12
      $region11: #{tpu_custom_call.1} parent=5 // pred_region
        %p116 = pneg %p47
        %p117 = pneg %p44
        %s118 = sand.u32 %s38, 1
        %s119 = scalar_lea.sflag [#allocation6], %s118
        %s120 = sand.u32 %s38, 1
        %s121 = smul.addr %s120, 16
        %s122 = scalar_lea.vmem [#allocation5], %s121
        %p123 = pneg %p66
        %p124 = pneg %p63
        %s125 = sand.u32 %s29, 1
        %s126 = scalar_lea.sflag [#allocation8], %s125
        %s127 = sand.u32 %s57, 1
        %s128 = smul.addr %s127, 32
        %s129 = scalar_lea.vmem [#allocation7], %s128
        %p130 = pneg %p85
        %p131 = pneg %p82
        %s132 = sand.u32 %s29, 1
        %s133 = scalar_lea.sflag [#allocation8], %s132
        %s134 = sand.u32 %s76, 1
        %s135 = smul.addr %s134, 64
        %s136 = scalar_lea.vmem [#allocation9], %s135
        %p137 = pneg %p104
        %p138 = pneg %p101
        %s139 = sand.u32 %s95, 1
        %s140 = scalar_lea.sflag [#allocation11], %s139
        %s141 = sand.u32 %s95, 1
        %s142 = smul.addr %s141, 128
        %s143 = scalar_lea.vmem [#allocation10], %s142
        %s144 = smul.u32 4, %s29
        %s145 = smul.u32 4, %s29
        %s146 = smul.u32 4, %s29
        %s147 = smul.u32 4, %s29
        %v148 = vlaneseq
        %v149 = vand.u32 %v148, 127
        %v150 = vadd.s32 %v149, 128
        %v151 = vand.u32 %v149, 15
        %v152 = vand.u32 %v150, 15
        %v153 = vshra.s32 %v149, 4
        %v154 = vshra.s32 %v150, 4
        %v155 = vlaneseq
        %v156 = vshrl.u32 %v155, 7
        %v157 = vadd.s32 %v156, 8
        %s158 = smul.u32 %s29, 4
        %p159 = scmp.lt.s32.totalorder %s158, 7
        %s160 = scalar_select %p159, %s158, 7
        %s161 = smul.u32 %s160, 2
        %s162 = sld [smem:[#allocation3 + %s161]]
        %s163 = sadd.s32 %s161, 1
        %s164 = sld [smem:[#allocation3 + %s163]]
        %s165 = ssub.s32 %s162, 3
        %p166 = scmp.gt.s32.totalorder %s165, 0
        %s167 = scalar_select %p166, %s165, 0
        %s168 = sadd.s32 %s162, 4
        %p169 = scmp.gt.s32.totalorder %s168, 0
        %s170 = scalar_select %p169, %s168, 0
        %p171 = scmp.lt.s32.totalorder %s170, 16
        %s172 = scalar_select %p171, %s170, 16
        %s173 = ssub.s32 %s164, 3
        %p174 = scmp.gt.s32.totalorder %s173, 0
        %s175 = scalar_select %p174, %s173, 0
        %s176 = sadd.s32 %s164, 4
        %p177 = scmp.gt.s32.totalorder %s176, 0
        %s178 = scalar_select %p177, %s176, 0
        %p179 = scmp.lt.s32.totalorder %s178, 16
        %s180 = scalar_select %p179, %s178, 16
        %v181 = vstv %s167
        %vm182 = vcmp.ge.s32.totalorder %v151, %v181
        %vm183 = vcmp.ge.s32.totalorder %v152, %v181
        %v184 = vstv %s172
        %vm185 = vcmp.lt.s32.totalorder %v151, %v184
        %vm186 = vcmp.lt.s32.totalorder %v152, %v184
        %vm187 = vmand %vm182, %vm185
        %vm188 = vmand %vm183, %vm186
        %v189 = vstv %s175
        %vm190 = vcmp.ge.s32.totalorder %v153, %v189
        %vm191 = vcmp.ge.s32.totalorder %v154, %v189
        %vm192 = vmand %vm187, %vm190
        %vm193 = vmand %vm188, %vm191
        %v194 = vstv %s180
        %vm195 = vcmp.lt.s32.totalorder %v153, %v194
        %vm196 = vcmp.lt.s32.totalorder %v154, %v194
        %vm197 = vmand %vm192, %vm195
        %vm198 = vmand %vm193, %vm196
        %v199 = vstv %s162
        %v200 = vsub.s32 %v151, %v199
        %v201 = vsub.s32 %v152, %v199
        %v202 = vadd.s32 %v200, 3
        %v203 = vadd.s32 %v201, 3
        %v204 = vcvt.s32.f32 %v202
        %v205 = vcvt.s32.f32 %v203
        %v206 = vadd.f32 %v204, 1.0
        %v207 = vadd.f32 %v205, 1.0
        %v208 = vsub.f32 %v206, 4.0
        %v209 = vsub.f32 %v207, 4.0
        %v210 = vmul.f32 %v208, 0.5714286
        %v211 = vmul.f32 %v209, 0.5714286
        %v212 = vstv %s164
        %v213 = vsub.s32 %v153, %v212
        %v214 = vsub.s32 %v154, %v212
        %v215 = vadd.s32 %v213, 3
        %v216 = vadd.s32 %v214, 3
        %v217 = vcvt.s32.f32 %v215
        %v218 = vcvt.s32.f32 %v216
        %v219 = vadd.f32 %v217, 1.0
        %v220 = vadd.f32 %v218, 1.0
        %v221 = vsub.f32 %v219, 4.0
        %v222 = vsub.f32 %v220, 4.0
        %v223 = vmul.f32 %v221, 0.5714286
        %v224 = vmul.f32 %v222, 0.5714286
        %v225 = vmul.f32 %v210, %v210
        %v226 = vmul.f32 %v211, %v211
        %v227 = vmul.f32 %v223, %v223
        %v228 = vmul.f32 %v224, %v224
        %v229 = vadd.f32 %v225, %v227
        %v230 = vadd.f32 %v226, %v228
        %v231 = vmul.f32 %v229, -0.5
        %v232 = vmul.f32 %v230, -0.5
        %v233 = vmul.f32 %v231, 1.442695
        %v234 = vpow.pop %v233
        %v235 = vmul.f32 %v232, 1.442695
        %v236 = vpow.pop %v235
        %v237 = vsel %vm197, %v234, 0.0
        %v238 = vsel %vm198, %v236, 0.0
        %s239 = sld [smem:[#allocation4 + %s160]]
        %p240 = scmp.gt.s32.totalorder %s239, 0
        %s241 = scalar_select %p240, %s239, 0
        %s242 = sadd.s32 %s239, 1
        %p243 = scmp.gt.s32.totalorder %s242, 0
        %s244 = scalar_select %p243, %s242, 0
        %p245 = scmp.lt.s32.totalorder %s244, 2
        %s246 = scalar_select %p245, %s244, 2
        %v247 = vstv %s241
        %vm248 = vcmp.ge.s32.totalorder %v156, %v247
        %v249 = vstv %s246
        %vm250 = vcmp.lt.s32.totalorder %v156, %v249
        %vm251 = vmand %vm248, %vm250
        %v252 = vstv %s239
        %v253 = vsub.s32 %v156, %v252
        %v254 = vcvt.s32.f32 %v253
        %v255 = vadd.f32 %v254, 1.0
        %v256 = vsub.f32 %v255, 1.0
        %v257 = vmul.f32 %v256, 4.0
        %v258 = vmul.f32 %v257, %v257
        %v259 = vmul.f32 %v258, -0.5
        %v260 = vmul.f32 %v259, 1.442695
        %v261 = vpow.pop %v260
        %v262 = vsel %vm251, %v261, 0.0
        %v263 = vmul.f32 %v262, %v237
        %v264 = vmul.f32 %v262, %v238
        %v267 = vcombine.low %v263, %v264
        %v269 = vunpack.c.l.s4 1983009808
        %v270 = vunpack.c.0.s8 %v269
        %v271 = vlaneseq
        %v272 = vshrl.u32 %v271, 7
        %v273 = vsub.s32 %v270, %v272
        %v274 = vrot.slane %v267, %v273
        %276 = vst [vmem:[%s122] sm:$0xf] %v274
        %s277 = sadd.s32 %s160, 8
        %s278 = sld [smem:[#allocation4 + %s277]]
        %s279 = ssub.s32 %s278, 1
        %p280 = scmp.gt.s32.totalorder %s279, 0
        %s281 = scalar_select %p280, %s279, 0
        %s282 = sadd.s32 %s278, 2
        %p283 = scmp.gt.s32.totalorder %s282, 0
        %s284 = scalar_select %p283, %s282, 0
        %p285 = scmp.lt.s32.totalorder %s284, 4
        %s286 = scalar_select %p285, %s284, 4
        %v287 = vstv %s281
        %vm288 = vcmp.ge.s32.totalorder %v156, %v287
        %v289 = vstv %s286
        %vm290 = vcmp.lt.s32.totalorder %v156, %v289
        %vm291 = vmand %vm288, %vm290
        %v292 = vstv %s278
        %v293 = vsub.s32 %v156, %v292
        %v294 = vadd.s32 %v293, 1
        %v295 = vcvt.s32.f32 %v294
        %v296 = vadd.f32 %v295, 1.0
        %v297 = vsub.f32 %v296, 2.0
        %v298 = vmul.f32 %v297, 1.3333334
        %v299 = vmul.f32 %v298, %v298
        %v300 = vmul.f32 %v299, -0.5
        %v301 = vmul.f32 %v300, 1.442695
        %v302 = vpow.pop %v301
        %v303 = vsel %vm291, %v302, 0.0
        %v304 = vmul.f32 %v303, %v237
        %v305 = vmul.f32 %v303, %v238
        %v308 = vcombine.low %v304, %v305
        %310 = vst [vmem:[%s129] sm:$0xff] %v308
        %s311 = sadd.s32 %s160, 16
        %s312 = sld [smem:[#allocation4 + %s311]]
        %s313 = ssub.s32 %s312, 2
        %p314 = scmp.gt.s32.totalorder %s313, 0
        %s315 = scalar_select %p314, %s313, 0
        %s316 = sadd.s32 %s312, 3
        %p317 = scmp.gt.s32.totalorder %s316, 0
        %s318 = scalar_select %p317, %s316, 0
        %p319 = scmp.lt.s32.totalorder %s318, 8
        %s320 = scalar_select %p319, %s318, 8
        %v321 = vstv %s315
        %vm322 = vcmp.ge.s32.totalorder %v156, %v321
        %v323 = vstv %s320
        %vm324 = vcmp.lt.s32.totalorder %v156, %v323
        %vm325 = vmand %vm322, %vm324
        %v326 = vstv %s312
        %v327 = vsub.s32 %v156, %v326
        %v328 = vadd.s32 %v327, 2
        %v329 = vcvt.s32.f32 %v328
        %v330 = vadd.f32 %v329, 1.0
        %v331 = vsub.f32 %v330, 3.0
        %v332 = vmul.f32 %v331, 0.8
        %v333 = vmul.f32 %v332, %v332
        %v334 = vmul.f32 %v333, -0.5
        %v335 = vmul.f32 %v334, 1.442695
        %v336 = vpow.pop %v335
        %v337 = vsel %vm325, %v336, 0.0
        %v338 = vmul.f32 %v337, %v237
        %v339 = vmul.f32 %v337, %v238
        %340 = vst [vmem:[%s136] sm:$0xff] %v338
        %341 = vst [vmem:[%s136 + $0x8] sm:$0xff] %v339
        %s342 = sadd.s32 %s160, 24
        %s343 = sld [smem:[#allocation4 + %s342]]
        %s344 = ssub.s32 %s343, 3
        %p345 = scmp.gt.s32.totalorder %s344, 0
        %s346 = scalar_select %p345, %s344, 0
        %s347 = sadd.s32 %s343, 4
        %p348 = scmp.gt.s32.totalorder %s347, 0
        %s349 = scalar_select %p348, %s347, 0
        %p350 = scmp.lt.s32.totalorder %s349, 16
        %s351 = scalar_select %p350, %s349, 16
        %v352 = vstv %s346
        %vm353 = vcmp.ge.s32.totalorder %v156, %v352
        %vm354 = vcmp.ge.s32.totalorder %v157, %v352
        %v355 = vstv %s351
        %vm356 = vcmp.lt.s32.totalorder %v156, %v355
        %vm357 = vcmp.lt.s32.totalorder %v157, %v355
        %vm358 = vmand %vm353, %vm356
        %vm359 = vmand %vm354, %vm357
        %v360 = vstv %s343
        %v361 = vsub.s32 %v156, %v360
        %v362 = vsub.s32 %v157, %v360
        %v363 = vadd.s32 %v361, 3
        %v364 = vadd.s32 %v362, 3
        %v365 = vcvt.s32.f32 %v363
        %v366 = vcvt.s32.f32 %v364
        %v367 = vadd.f32 %v365, 1.0
        %v368 = vadd.f32 %v366, 1.0
        %v369 = vsub.f32 %v367, 4.0
        %v370 = vsub.f32 %v368, 4.0
        %v371 = vmul.f32 %v369, 0.5714286
        %v372 = vmul.f32 %v370, 0.5714286
        %v373 = vmul.f32 %v371, %v371
        %v374 = vmul.f32 %v372, %v372
        %v375 = vmul.f32 %v373, -0.5
        %v376 = vmul.f32 %v374, -0.5
        %v377 = vmul.f32 %v375, 1.442695
        %v378 = vpow.pop %v377
        %v379 = vmul.f32 %v376, 1.442695
        %v380 = vpow.pop %v379
        %v381 = vsel %vm358, %v378, 0.0
        %v382 = vsel %vm359, %v380, 0.0
        %v383 = vmul.f32 %v381, %v237
        %v384 = vmul.f32 %v381, %v238
        %v385 = vmul.f32 %v382, %v237
        %v386 = vmul.f32 %v382, %v238
        %387 = vst [vmem:[%s143] sm:$0xff] %v383
        %388 = vst [vmem:[%s143 + $0x8] sm:$0xff] %v384
        %389 = vst [vmem:[%s143 + $0x10] sm:$0xff] %v385
        %390 = vst [vmem:[%s143 + $0x18] sm:$0xff] %v386
        %s391 = sadd.s32 %s158, 1
        %p392 = scmp.lt.s32.totalorder %s391, 7
        %s393 = scalar_select %p392, %s391, 7
        %s394 = smul.u32 %s393, 2
        %s395 = sld [smem:[#allocation3 + %s394]]
        %s396 = sadd.s32 %s394, 1
        %s397 = sld [smem:[#allocation3 + %s396]]
        %s398 = ssub.s32 %s395, 3
        %p399 = scmp.gt.s32.totalorder %s398, 0
        %s400 = scalar_select %p399, %s398, 0
        %s401 = sadd.s32 %s395, 4
        %p402 = scmp.gt.s32.totalorder %s401, 0
        %s403 = scalar_select %p402, %s401, 0
        %p404 = scmp.lt.s32.totalorder %s403, 16
        %s405 = scalar_select %p404, %s403, 16
        %s406 = ssub.s32 %s397, 3
        %p407 = scmp.gt.s32.totalorder %s406, 0
        %s408 = scalar_select %p407, %s406, 0
        %s409 = sadd.s32 %s397, 4
        %p410 = scmp.gt.s32.totalorder %s409, 0
        %s411 = scalar_select %p410, %s409, 0
        %p412 = scmp.lt.s32.totalorder %s411, 16
        %s413 = scalar_select %p412, %s411, 16
        %v414 = vstv %s400
        %vm415 = vcmp.ge.s32.totalorder %v151, %v414
        %vm416 = vcmp.ge.s32.totalorder %v152, %v414
        %v417 = vstv %s405
        %vm418 = vcmp.lt.s32.totalorder %v151, %v417
        %vm419 = vcmp.lt.s32.totalorder %v152, %v417
        %vm420 = vmand %vm415, %vm418
        %vm421 = vmand %vm416, %vm419
        %v422 = vstv %s408
        %vm423 = vcmp.ge.s32.totalorder %v153, %v422
        %vm424 = vcmp.ge.s32.totalorder %v154, %v422
        %vm425 = vmand %vm420, %vm423
        %vm426 = vmand %vm421, %vm424
        %v427 = vstv %s413
        %vm428 = vcmp.lt.s32.totalorder %v153, %v427
        %vm429 = vcmp.lt.s32.totalorder %v154, %v427
        %vm430 = vmand %vm425, %vm428
        %vm431 = vmand %vm426, %vm429
        %v432 = vstv %s395
        %v433 = vsub.s32 %v151, %v432
        %v434 = vsub.s32 %v152, %v432
        %v435 = vadd.s32 %v433, 3
        %v436 = vadd.s32 %v434, 3
        %v437 = vcvt.s32.f32 %v435
        %v438 = vcvt.s32.f32 %v436
        %v439 = vadd.f32 %v437, 1.0
        %v440 = vadd.f32 %v438, 1.0
        %v441 = vsub.f32 %v439, 4.0
        %v442 = vsub.f32 %v440, 4.0
        %v443 = vmul.f32 %v441, 0.5714286
        %v444 = vmul.f32 %v442, 0.5714286
        %v445 = vstv %s397
        %v446 = vsub.s32 %v153, %v445
        %v447 = vsub.s32 %v154, %v445
        %v448 = vadd.s32 %v446, 3
        %v449 = vadd.s32 %v447, 3
        %v450 = vcvt.s32.f32 %v448
        %v451 = vcvt.s32.f32 %v449
        %v452 = vadd.f32 %v450, 1.0
        %v453 = vadd.f32 %v451, 1.0
        %v454 = vsub.f32 %v452, 4.0
        %v455 = vsub.f32 %v453, 4.0
        %v456 = vmul.f32 %v454, 0.5714286
        %v457 = vmul.f32 %v455, 0.5714286
        %v458 = vmul.f32 %v443, %v443
        %v459 = vmul.f32 %v444, %v444
        %v460 = vmul.f32 %v456, %v456
        %v461 = vmul.f32 %v457, %v457
        %v462 = vadd.f32 %v458, %v460
        %v463 = vadd.f32 %v459, %v461
        %v464 = vmul.f32 %v462, -0.5
        %v465 = vmul.f32 %v463, -0.5
        %v466 = vmul.f32 %v464, 1.442695
        %v467 = vpow.pop %v466
        %v468 = vmul.f32 %v465, 1.442695
        %v469 = vpow.pop %v468
        %v470 = vsel %vm430, %v467, 0.0
        %v471 = vsel %vm431, %v469, 0.0
        %s472 = sld [smem:[#allocation4 + %s393]]
        %p473 = scmp.gt.s32.totalorder %s472, 0
        %s474 = scalar_select %p473, %s472, 0
        %s475 = sadd.s32 %s472, 1
        %p476 = scmp.gt.s32.totalorder %s475, 0
        %s477 = scalar_select %p476, %s475, 0
        %p478 = scmp.lt.s32.totalorder %s477, 2
        %s479 = scalar_select %p478, %s477, 2
        %v480 = vstv %s474
        %vm481 = vcmp.ge.s32.totalorder %v156, %v480
        %v482 = vstv %s479
        %vm483 = vcmp.lt.s32.totalorder %v156, %v482
        %vm484 = vmand %vm481, %vm483
        %v485 = vstv %s472
        %v486 = vsub.s32 %v156, %v485
        %v487 = vcvt.s32.f32 %v486
        %v488 = vadd.f32 %v487, 1.0
        %v489 = vsub.f32 %v488, 1.0
        %v490 = vmul.f32 %v489, 4.0
        %v491 = vmul.f32 %v490, %v490
        %v492 = vmul.f32 %v491, -0.5
        %v493 = vmul.f32 %v492, 1.442695
        %v494 = vpow.pop %v493
        %v495 = vsel %vm484, %v494, 0.0
        %v496 = vmul.f32 %v495, %v470
        %v497 = vmul.f32 %v495, %v471
        %v500 = vcombine.low %v496, %v497
        %v502 = vunpack.c.l.s4 1983009808
        %v503 = vunpack.c.0.s8 %v502
        %v504 = vlaneseq
        %v505 = vshrl.u32 %v504, 7
        %v506 = vsub.s32 %v503, %v505
        %v507 = vrot.slane %v500, %v506
        %s509 = scalar_lea.vmem %s122, 4 [#allocation5]
        %510 = vst [vmem:[%s509] sm:$0xf] %v507
        %s511 = sadd.s32 %s393, 8
        %s512 = sld [smem:[#allocation4 + %s511]]
        %s513 = ssub.s32 %s512, 1
        %p514 = scmp.gt.s32.totalorder %s513, 0
        %s515 = scalar_select %p514, %s513, 0
        %s516 = sadd.s32 %s512, 2
        %p517 = scmp.gt.s32.totalorder %s516, 0
        %s518 = scalar_select %p517, %s516, 0
        %p519 = scmp.lt.s32.totalorder %s518, 4
        %s520 = scalar_select %p519, %s518, 4
        %v521 = vstv %s515
        %vm522 = vcmp.ge.s32.totalorder %v156, %v521
        %v523 = vstv %s520
        %vm524 = vcmp.lt.s32.totalorder %v156, %v523
        %vm525 = vmand %vm522, %vm524
        %v526 = vstv %s512
        %v527 = vsub.s32 %v156, %v526
        %v528 = vadd.s32 %v527, 1
        %v529 = vcvt.s32.f32 %v528
        %v530 = vadd.f32 %v529, 1.0
        %v531 = vsub.f32 %v530, 2.0
        %v532 = vmul.f32 %v531, 1.3333334
        %v533 = vmul.f32 %v532, %v532
        %v534 = vmul.f32 %v533, -0.5
        %v535 = vmul.f32 %v534, 1.442695
        %v536 = vpow.pop %v535
        %v537 = vsel %vm525, %v536, 0.0
        %v538 = vmul.f32 %v537, %v470
        %v539 = vmul.f32 %v537, %v471
        %v542 = vcombine.low %v538, %v539
        %s544 = scalar_lea.vmem %s129, 8 [#allocation7]
        %545 = vst [vmem:[%s544] sm:$0xff] %v542
        %s546 = sadd.s32 %s393, 16
        %s547 = sld [smem:[#allocation4 + %s546]]
        %s548 = ssub.s32 %s547, 2
        %p549 = scmp.gt.s32.totalorder %s548, 0
        %s550 = scalar_select %p549, %s548, 0
        %s551 = sadd.s32 %s547, 3
        %p552 = scmp.gt.s32.totalorder %s551, 0
        %s553 = scalar_select %p552, %s551, 0
        %p554 = scmp.lt.s32.totalorder %s553, 8
        %s555 = scalar_select %p554, %s553, 8
        %v556 = vstv %s550
        %vm557 = vcmp.ge.s32.totalorder %v156, %v556
        %v558 = vstv %s555
        %vm559 = vcmp.lt.s32.totalorder %v156, %v558
        %vm560 = vmand %vm557, %vm559
        %v561 = vstv %s547
        %v562 = vsub.s32 %v156, %v561
        %v563 = vadd.s32 %v562, 2
        %v564 = vcvt.s32.f32 %v563
        %v565 = vadd.f32 %v564, 1.0
        %v566 = vsub.f32 %v565, 3.0
        %v567 = vmul.f32 %v566, 0.8
        %v568 = vmul.f32 %v567, %v567
        %v569 = vmul.f32 %v568, -0.5
        %v570 = vmul.f32 %v569, 1.442695
        %v571 = vpow.pop %v570
        %v572 = vsel %vm560, %v571, 0.0
        %v573 = vmul.f32 %v572, %v470
        %v574 = vmul.f32 %v572, %v471
        %s575 = scalar_lea.vmem %s136, 16 [#allocation9]
        %576 = vst [vmem:[%s575] sm:$0xff] %v573
        %577 = vst [vmem:[%s575 + $0x8] sm:$0xff] %v574
        %s578 = sadd.s32 %s393, 24
        %s579 = sld [smem:[#allocation4 + %s578]]
        %s580 = ssub.s32 %s579, 3
        %p581 = scmp.gt.s32.totalorder %s580, 0
        %s582 = scalar_select %p581, %s580, 0
        %s583 = sadd.s32 %s579, 4
        %p584 = scmp.gt.s32.totalorder %s583, 0
        %s585 = scalar_select %p584, %s583, 0
        %p586 = scmp.lt.s32.totalorder %s585, 16
        %s587 = scalar_select %p586, %s585, 16
        %v588 = vstv %s582
        %vm589 = vcmp.ge.s32.totalorder %v156, %v588
        %vm590 = vcmp.ge.s32.totalorder %v157, %v588
        %v591 = vstv %s587
        %vm592 = vcmp.lt.s32.totalorder %v156, %v591
        %vm593 = vcmp.lt.s32.totalorder %v157, %v591
        %vm594 = vmand %vm589, %vm592
        %vm595 = vmand %vm590, %vm593
        %v596 = vstv %s579
        %v597 = vsub.s32 %v156, %v596
        %v598 = vsub.s32 %v157, %v596
        %v599 = vadd.s32 %v597, 3
        %v600 = vadd.s32 %v598, 3
        %v601 = vcvt.s32.f32 %v599
        %v602 = vcvt.s32.f32 %v600
        %v603 = vadd.f32 %v601, 1.0
        %v604 = vadd.f32 %v602, 1.0
        %v605 = vsub.f32 %v603, 4.0
        %v606 = vsub.f32 %v604, 4.0
        %v607 = vmul.f32 %v605, 0.5714286
        %v608 = vmul.f32 %v606, 0.5714286
        %v609 = vmul.f32 %v607, %v607
        %v610 = vmul.f32 %v608, %v608
        %v611 = vmul.f32 %v609, -0.5
        %v612 = vmul.f32 %v610, -0.5
        %v613 = vmul.f32 %v611, 1.442695
        %v614 = vpow.pop %v613
        %v615 = vmul.f32 %v612, 1.442695
        %v616 = vpow.pop %v615
        %v617 = vsel %vm594, %v614, 0.0
        %v618 = vsel %vm595, %v616, 0.0
        %v619 = vmul.f32 %v617, %v470
        %v620 = vmul.f32 %v617, %v471
        %v621 = vmul.f32 %v618, %v470
        %v622 = vmul.f32 %v618, %v471
        %s623 = scalar_lea.vmem %s143, 32 [#allocation10]
        %624 = vst [vmem:[%s623] sm:$0xff] %v619
        %625 = vst [vmem:[%s623 + $0x8] sm:$0xff] %v620
        %626 = vst [vmem:[%s623 + $0x10] sm:$0xff] %v621
        %627 = vst [vmem:[%s623 + $0x18] sm:$0xff] %v622
        %s628 = sadd.s32 %s158, 2
        %p629 = scmp.lt.s32.totalorder %s628, 7
        %s630 = scalar_select %p629, %s628, 7
        %s631 = smul.u32 %s630, 2
        %s632 = sld [smem:[#allocation3 + %s631]]
        %s633 = sadd.s32 %s631, 1
        %s634 = sld [smem:[#allocation3 + %s633]]
        %s635 = ssub.s32 %s632, 3
        %p636 = scmp.gt.s32.totalorder %s635, 0
        %s637 = scalar_select %p636, %s635, 0
        %s638 = sadd.s32 %s632, 4
        %p639 = scmp.gt.s32.totalorder %s638, 0
        %s640 = scalar_select %p639, %s638, 0
        %p641 = scmp.lt.s32.totalorder %s640, 16
        %s642 = scalar_select %p641, %s640, 16
        %s643 = ssub.s32 %s634, 3
        %p644 = scmp.gt.s32.totalorder %s643, 0
        %s645 = scalar_select %p644, %s643, 0
        %s646 = sadd.s32 %s634, 4
        %p647 = scmp.gt.s32.totalorder %s646, 0
        %s648 = scalar_select %p647, %s646, 0
        %p649 = scmp.lt.s32.totalorder %s648, 16
        %s650 = scalar_select %p649, %s648, 16
        %v651 = vstv %s637
        %vm652 = vcmp.ge.s32.totalorder %v151, %v651
        %vm653 = vcmp.ge.s32.totalorder %v152, %v651
        %v654 = vstv %s642
        %vm655 = vcmp.lt.s32.totalorder %v151, %v654
        %vm656 = vcmp.lt.s32.totalorder %v152, %v654
        %vm657 = vmand %vm652, %vm655
        %vm658 = vmand %vm653, %vm656
        %v659 = vstv %s645
        %vm660 = vcmp.ge.s32.totalorder %v153, %v659
        %vm661 = vcmp.ge.s32.totalorder %v154, %v659
        %vm662 = vmand %vm657, %vm660
        %vm663 = vmand %vm658, %vm661
        %v664 = vstv %s650
        %vm665 = vcmp.lt.s32.totalorder %v153, %v664
        %vm666 = vcmp.lt.s32.totalorder %v154, %v664
        %vm667 = vmand %vm662, %vm665
        %vm668 = vmand %vm663, %vm666
        %v669 = vstv %s632
        %v670 = vsub.s32 %v151, %v669
        %v671 = vsub.s32 %v152, %v669
        %v672 = vadd.s32 %v670, 3
        %v673 = vadd.s32 %v671, 3
        %v674 = vcvt.s32.f32 %v672
        %v675 = vcvt.s32.f32 %v673
        %v676 = vadd.f32 %v674, 1.0
        %v677 = vadd.f32 %v675, 1.0
        %v678 = vsub.f32 %v676, 4.0
        %v679 = vsub.f32 %v677, 4.0
        %v680 = vmul.f32 %v678, 0.5714286
        %v681 = vmul.f32 %v679, 0.5714286
        %v682 = vstv %s634
        %v683 = vsub.s32 %v153, %v682
        %v684 = vsub.s32 %v154, %v682
        %v685 = vadd.s32 %v683, 3
        %v686 = vadd.s32 %v684, 3
        %v687 = vcvt.s32.f32 %v685
        %v688 = vcvt.s32.f32 %v686
        %v689 = vadd.f32 %v687, 1.0
        %v690 = vadd.f32 %v688, 1.0
        %v691 = vsub.f32 %v689, 4.0
        %v692 = vsub.f32 %v690, 4.0
        %v693 = vmul.f32 %v691, 0.5714286
        %v694 = vmul.f32 %v692, 0.5714286
        %v695 = vmul.f32 %v680, %v680
        %v696 = vmul.f32 %v681, %v681
        %v697 = vmul.f32 %v693, %v693
        %v698 = vmul.f32 %v694, %v694
        %v699 = vadd.f32 %v695, %v697
        %v700 = vadd.f32 %v696, %v698
        %v701 = vmul.f32 %v699, -0.5
        %v702 = vmul.f32 %v700, -0.5
        %v703 = vmul.f32 %v701, 1.442695
        %v704 = vpow.pop %v703
        %v705 = vmul.f32 %v702, 1.442695
        %v706 = vpow.pop %v705
        %v707 = vsel %vm667, %v704, 0.0
        %v708 = vsel %vm668, %v706, 0.0
        %s709 = sld [smem:[#allocation4 + %s630]]
        %p710 = scmp.gt.s32.totalorder %s709, 0
        %s711 = scalar_select %p710, %s709, 0
        %s712 = sadd.s32 %s709, 1
        %p713 = scmp.gt.s32.totalorder %s712, 0
        %s714 = scalar_select %p713, %s712, 0
        %p715 = scmp.lt.s32.totalorder %s714, 2
        %s716 = scalar_select %p715, %s714, 2
        %v717 = vstv %s711
        %vm718 = vcmp.ge.s32.totalorder %v156, %v717
        %v719 = vstv %s716
        %vm720 = vcmp.lt.s32.totalorder %v156, %v719
        %vm721 = vmand %vm718, %vm720
        %v722 = vstv %s709
        %v723 = vsub.s32 %v156, %v722
        %v724 = vcvt.s32.f32 %v723
        %v725 = vadd.f32 %v724, 1.0
        %v726 = vsub.f32 %v725, 1.0
        %v727 = vmul.f32 %v726, 4.0
        %v728 = vmul.f32 %v727, %v727
        %v729 = vmul.f32 %v728, -0.5
        %v730 = vmul.f32 %v729, 1.442695
        %v731 = vpow.pop %v730
        %v732 = vsel %vm721, %v731, 0.0
        %v733 = vmul.f32 %v732, %v707
        %v734 = vmul.f32 %v732, %v708
        %v737 = vcombine.low %v733, %v734
        %v739 = vunpack.c.l.s4 1983009808
        %v740 = vunpack.c.0.s8 %v739
        %v741 = vlaneseq
        %v742 = vshrl.u32 %v741, 7
        %v743 = vsub.s32 %v740, %v742
        %v744 = vrot.slane %v737, %v743
        %s746 = scalar_lea.vmem %s122, 8 [#allocation5]
        %747 = vst [vmem:[%s746] sm:$0xf] %v744
        %s748 = sadd.s32 %s630, 8
        %s749 = sld [smem:[#allocation4 + %s748]]
        %s750 = ssub.s32 %s749, 1
        %p751 = scmp.gt.s32.totalorder %s750, 0
        %s752 = scalar_select %p751, %s750, 0
        %s753 = sadd.s32 %s749, 2
        %p754 = scmp.gt.s32.totalorder %s753, 0
        %s755 = scalar_select %p754, %s753, 0
        %p756 = scmp.lt.s32.totalorder %s755, 4
        %s757 = scalar_select %p756, %s755, 4
        %v758 = vstv %s752
        %vm759 = vcmp.ge.s32.totalorder %v156, %v758
        %v760 = vstv %s757
        %vm761 = vcmp.lt.s32.totalorder %v156, %v760
        %vm762 = vmand %vm759, %vm761
        %v763 = vstv %s749
        %v764 = vsub.s32 %v156, %v763
        %v765 = vadd.s32 %v764, 1
        %v766 = vcvt.s32.f32 %v765
        %v767 = vadd.f32 %v766, 1.0
        %v768 = vsub.f32 %v767, 2.0
        %v769 = vmul.f32 %v768, 1.3333334
        %v770 = vmul.f32 %v769, %v769
        %v771 = vmul.f32 %v770, -0.5
        %v772 = vmul.f32 %v771, 1.442695
        %v773 = vpow.pop %v772
        %v774 = vsel %vm762, %v773, 0.0
        %v775 = vmul.f32 %v774, %v707
        %v776 = vmul.f32 %v774, %v708
        %v779 = vcombine.low %v775, %v776
        %s781 = scalar_lea.vmem %s129, 16 [#allocation7]
        %782 = vst [vmem:[%s781] sm:$0xff] %v779
        %s783 = sadd.s32 %s630, 16
        %s784 = sld [smem:[#allocation4 + %s783]]
        %s785 = ssub.s32 %s784, 2
        %p786 = scmp.gt.s32.totalorder %s785, 0
        %s787 = scalar_select %p786, %s785, 0
        %s788 = sadd.s32 %s784, 3
        %p789 = scmp.gt.s32.totalorder %s788, 0
        %s790 = scalar_select %p789, %s788, 0
        %p791 = scmp.lt.s32.totalorder %s790, 8
        %s792 = scalar_select %p791, %s790, 8
        %v793 = vstv %s787
        %vm794 = vcmp.ge.s32.totalorder %v156, %v793
        %v795 = vstv %s792
        %vm796 = vcmp.lt.s32.totalorder %v156, %v795
        %vm797 = vmand %vm794, %vm796
        %v798 = vstv %s784
        %v799 = vsub.s32 %v156, %v798
        %v800 = vadd.s32 %v799, 2
        %v801 = vcvt.s32.f32 %v800
        %v802 = vadd.f32 %v801, 1.0
        %v803 = vsub.f32 %v802, 3.0
        %v804 = vmul.f32 %v803, 0.8
        %v805 = vmul.f32 %v804, %v804
        %v806 = vmul.f32 %v805, -0.5
        %v807 = vmul.f32 %v806, 1.442695
        %v808 = vpow.pop %v807
        %v809 = vsel %vm797, %v808, 0.0
        %v810 = vmul.f32 %v809, %v707
        %v811 = vmul.f32 %v809, %v708
        %s812 = scalar_lea.vmem %s136, 32 [#allocation9]
        %813 = vst [vmem:[%s812] sm:$0xff] %v810
        %814 = vst [vmem:[%s812 + $0x8] sm:$0xff] %v811
        %s815 = sadd.s32 %s630, 24
        %s816 = sld [smem:[#allocation4 + %s815]]
        %s817 = ssub.s32 %s816, 3
        %p818 = scmp.gt.s32.totalorder %s817, 0
        %s819 = scalar_select %p818, %s817, 0
        %s820 = sadd.s32 %s816, 4
        %p821 = scmp.gt.s32.totalorder %s820, 0
        %s822 = scalar_select %p821, %s820, 0
        %p823 = scmp.lt.s32.totalorder %s822, 16
        %s824 = scalar_select %p823, %s822, 16
        %v825 = vstv %s819
        %vm826 = vcmp.ge.s32.totalorder %v156, %v825
        %vm827 = vcmp.ge.s32.totalorder %v157, %v825
        %v828 = vstv %s824
        %vm829 = vcmp.lt.s32.totalorder %v156, %v828
        %vm830 = vcmp.lt.s32.totalorder %v157, %v828
        %vm831 = vmand %vm826, %vm829
        %vm832 = vmand %vm827, %vm830
        %v833 = vstv %s816
        %v834 = vsub.s32 %v156, %v833
        %v835 = vsub.s32 %v157, %v833
        %v836 = vadd.s32 %v834, 3
        %v837 = vadd.s32 %v835, 3
        %v838 = vcvt.s32.f32 %v836
        %v839 = vcvt.s32.f32 %v837
        %v840 = vadd.f32 %v838, 1.0
        %v841 = vadd.f32 %v839, 1.0
        %v842 = vsub.f32 %v840, 4.0
        %v843 = vsub.f32 %v841, 4.0
        %v844 = vmul.f32 %v842, 0.5714286
        %v845 = vmul.f32 %v843, 0.5714286
        %v846 = vmul.f32 %v844, %v844
        %v847 = vmul.f32 %v845, %v845
        %v848 = vmul.f32 %v846, -0.5
        %v849 = vmul.f32 %v847, -0.5
        %v850 = vmul.f32 %v848, 1.442695
        %v851 = vpow.pop %v850
        %v852 = vmul.f32 %v849, 1.442695
        %v853 = vpow.pop %v852
        %v854 = vsel %vm831, %v851, 0.0
        %v855 = vsel %vm832, %v853, 0.0
        %v856 = vmul.f32 %v854, %v707
        %v857 = vmul.f32 %v854, %v708
        %v858 = vmul.f32 %v855, %v707
        %v859 = vmul.f32 %v855, %v708
        %s860 = scalar_lea.vmem %s143, 64 [#allocation10]
        %861 = vst [vmem:[%s860] sm:$0xff] %v856
        %862 = vst [vmem:[%s860 + $0x8] sm:$0xff] %v857
        %863 = vst [vmem:[%s860 + $0x10] sm:$0xff] %v858
        %864 = vst [vmem:[%s860 + $0x18] sm:$0xff] %v859
        %s865 = sadd.s32 %s158, 3
        %p866 = scmp.lt.s32.totalorder %s865, 7
        %s867 = scalar_select %p866, %s865, 7
        %s868 = smul.u32 %s867, 2
        %s869 = sld [smem:[#allocation3 + %s868]]
        %s870 = sadd.s32 %s868, 1
        %s871 = sld [smem:[#allocation3 + %s870]]
        %s872 = ssub.s32 %s869, 3
        %p873 = scmp.gt.s32.totalorder %s872, 0
        %s874 = scalar_select %p873, %s872, 0
        %s875 = sadd.s32 %s869, 4
        %p876 = scmp.gt.s32.totalorder %s875, 0
        %s877 = scalar_select %p876, %s875, 0
        %p878 = scmp.lt.s32.totalorder %s877, 16
        %s879 = scalar_select %p878, %s877, 16
        %s880 = ssub.s32 %s871, 3
        %p881 = scmp.gt.s32.totalorder %s880, 0
        %s882 = scalar_select %p881, %s880, 0
        %s883 = sadd.s32 %s871, 4
        %p884 = scmp.gt.s32.totalorder %s883, 0
        %s885 = scalar_select %p884, %s883, 0
        %p886 = scmp.lt.s32.totalorder %s885, 16
        %s887 = scalar_select %p886, %s885, 16
        %v888 = vstv %s874
        %vm889 = vcmp.ge.s32.totalorder %v151, %v888
        %vm890 = vcmp.ge.s32.totalorder %v152, %v888
        %v891 = vstv %s879
        %vm892 = vcmp.lt.s32.totalorder %v151, %v891
        %vm893 = vcmp.lt.s32.totalorder %v152, %v891
        %vm894 = vmand %vm889, %vm892
        %vm895 = vmand %vm890, %vm893
        %v896 = vstv %s882
        %vm897 = vcmp.ge.s32.totalorder %v153, %v896
        %vm898 = vcmp.ge.s32.totalorder %v154, %v896
        %vm899 = vmand %vm894, %vm897
        %vm900 = vmand %vm895, %vm898
        %v901 = vstv %s887
        %vm902 = vcmp.lt.s32.totalorder %v153, %v901
        %vm903 = vcmp.lt.s32.totalorder %v154, %v901
        %vm904 = vmand %vm899, %vm902
        %vm905 = vmand %vm900, %vm903
        %v906 = vstv %s869
        %v907 = vsub.s32 %v151, %v906
        %v908 = vsub.s32 %v152, %v906
        %v909 = vadd.s32 %v907, 3
        %v910 = vadd.s32 %v908, 3
        %v911 = vcvt.s32.f32 %v909
        %v912 = vcvt.s32.f32 %v910
        %v913 = vadd.f32 %v911, 1.0
        %v914 = vadd.f32 %v912, 1.0
        %v915 = vsub.f32 %v913, 4.0
        %v916 = vsub.f32 %v914, 4.0
        %v917 = vmul.f32 %v915, 0.5714286
        %v918 = vmul.f32 %v916, 0.5714286
        %v919 = vstv %s871
        %v920 = vsub.s32 %v153, %v919
        %v921 = vsub.s32 %v154, %v919
        %v922 = vadd.s32 %v920, 3
        %v923 = vadd.s32 %v921, 3
        %v924 = vcvt.s32.f32 %v922
        %v925 = vcvt.s32.f32 %v923
        %v926 = vadd.f32 %v924, 1.0
        %v927 = vadd.f32 %v925, 1.0
        %v928 = vsub.f32 %v926, 4.0
        %v929 = vsub.f32 %v927, 4.0
        %v930 = vmul.f32 %v928, 0.5714286
        %v931 = vmul.f32 %v929, 0.5714286
        %v932 = vmul.f32 %v917, %v917
        %v933 = vmul.f32 %v918, %v918
        %v934 = vmul.f32 %v930, %v930
        %v935 = vmul.f32 %v931, %v931
        %v936 = vadd.f32 %v932, %v934
        %v937 = vadd.f32 %v933, %v935
        %v938 = vmul.f32 %v936, -0.5
        %v939 = vmul.f32 %v937, -0.5
        %v940 = vmul.f32 %v938, 1.442695
        %v941 = vpow.pop %v940
        %v942 = vmul.f32 %v939, 1.442695
        %v943 = vpow.pop %v942
        %v944 = vsel %vm904, %v941, 0.0
        %v945 = vsel %vm905, %v943, 0.0
        %s946 = sld [smem:[#allocation4 + %s867]]
        %p947 = scmp.gt.s32.totalorder %s946, 0
        %s948 = scalar_select %p947, %s946, 0
        %s949 = sadd.s32 %s946, 1
        %p950 = scmp.gt.s32.totalorder %s949, 0
        %s951 = scalar_select %p950, %s949, 0
        %p952 = scmp.lt.s32.totalorder %s951, 2
        %s953 = scalar_select %p952, %s951, 2
        %v954 = vstv %s948
        %vm955 = vcmp.ge.s32.totalorder %v156, %v954
        %v956 = vstv %s953
        %vm957 = vcmp.lt.s32.totalorder %v156, %v956
        %vm958 = vmand %vm955, %vm957
        %v959 = vstv %s946
        %v960 = vsub.s32 %v156, %v959
        %v961 = vcvt.s32.f32 %v960
        %v962 = vadd.f32 %v961, 1.0
        %v963 = vsub.f32 %v962, 1.0
        %v964 = vmul.f32 %v963, 4.0
        %v965 = vmul.f32 %v964, %v964
        %v966 = vmul.f32 %v965, -0.5
        %v967 = vmul.f32 %v966, 1.442695
        %v968 = vpow.pop %v967
        %v969 = vsel %vm958, %v968, 0.0
        %v970 = vmul.f32 %v969, %v944
        %v971 = vmul.f32 %v969, %v945
        %v974 = vcombine.low %v970, %v971
        %v976 = vunpack.c.l.s4 1983009808
        %v977 = vunpack.c.0.s8 %v976
        %v978 = vlaneseq
        %v979 = vshrl.u32 %v978, 7
        %v980 = vsub.s32 %v977, %v979
        %v981 = vrot.slane %v974, %v980
        %s983 = scalar_lea.vmem %s122, 12 [#allocation5]
        %984 = vst [vmem:[%s983] sm:$0xf] %v981
        %s985 = sadd.s32 %s867, 8
        %s986 = sld [smem:[#allocation4 + %s985]]
        %s987 = ssub.s32 %s986, 1
        %p988 = scmp.gt.s32.totalorder %s987, 0
        %s989 = scalar_select %p988, %s987, 0
        %s990 = sadd.s32 %s986, 2
        %p991 = scmp.gt.s32.totalorder %s990, 0
        %s992 = scalar_select %p991, %s990, 0
        %p993 = scmp.lt.s32.totalorder %s992, 4
        %s994 = scalar_select %p993, %s992, 4
        %v995 = vstv %s989
        %vm996 = vcmp.ge.s32.totalorder %v156, %v995
        %v997 = vstv %s994
        %vm998 = vcmp.lt.s32.totalorder %v156, %v997
        %vm999 = vmand %vm996, %vm998
        %v1000 = vstv %s986
        %v1001 = vsub.s32 %v156, %v1000
        %v1002 = vadd.s32 %v1001, 1
        %v1003 = vcvt.s32.f32 %v1002
        %v1004 = vadd.f32 %v1003, 1.0
        %v1005 = vsub.f32 %v1004, 2.0
        %v1006 = vmul.f32 %v1005, 1.3333334
        %v1007 = vmul.f32 %v1006, %v1006
        %v1008 = vmul.f32 %v1007, -0.5
        %v1009 = vmul.f32 %v1008, 1.442695
        %v1010 = vpow.pop %v1009
        %v1011 = vsel %vm999, %v1010, 0.0
        %v1012 = vmul.f32 %v1011, %v944
        %v1013 = vmul.f32 %v1011, %v945
        %v1016 = vcombine.low %v1012, %v1013
        %s1018 = scalar_lea.vmem %s129, 24 [#allocation7]
        %1019 = vst [vmem:[%s1018] sm:$0xff] %v1016
        %s1020 = sadd.s32 %s867, 16
        %s1021 = sld [smem:[#allocation4 + %s1020]]
        %s1022 = ssub.s32 %s1021, 2
        %p1023 = scmp.gt.s32.totalorder %s1022, 0
        %s1024 = scalar_select %p1023, %s1022, 0
        %s1025 = sadd.s32 %s1021, 3
        %p1026 = scmp.gt.s32.totalorder %s1025, 0
        %s1027 = scalar_select %p1026, %s1025, 0
        %p1028 = scmp.lt.s32.totalorder %s1027, 8
        %s1029 = scalar_select %p1028, %s1027, 8
        %v1030 = vstv %s1024
        %vm1031 = vcmp.ge.s32.totalorder %v156, %v1030
        %v1032 = vstv %s1029
        %vm1033 = vcmp.lt.s32.totalorder %v156, %v1032
        %vm1034 = vmand %vm1031, %vm1033
        %v1035 = vstv %s1021
        %v1036 = vsub.s32 %v156, %v1035
        %v1037 = vadd.s32 %v1036, 2
        %v1038 = vcvt.s32.f32 %v1037
        %v1039 = vadd.f32 %v1038, 1.0
        %v1040 = vsub.f32 %v1039, 3.0
        %v1041 = vmul.f32 %v1040, 0.8
        %v1042 = vmul.f32 %v1041, %v1041
        %v1043 = vmul.f32 %v1042, -0.5
        %v1044 = vmul.f32 %v1043, 1.442695
        %v1045 = vpow.pop %v1044
        %v1046 = vsel %vm1034, %v1045, 0.0
        %v1047 = vmul.f32 %v1046, %v944
        %v1048 = vmul.f32 %v1046, %v945
        %s1049 = scalar_lea.vmem %s136, 48 [#allocation9]
        %1050 = vst [vmem:[%s1049] sm:$0xff] %v1047
        %1051 = vst [vmem:[%s1049 + $0x8] sm:$0xff] %v1048
        %s1052 = sadd.s32 %s867, 24
        %s1053 = sld [smem:[#allocation4 + %s1052]]
        %s1054 = ssub.s32 %s1053, 3
        %p1055 = scmp.gt.s32.totalorder %s1054, 0
        %s1056 = scalar_select %p1055, %s1054, 0
        %s1057 = sadd.s32 %s1053, 4
        %p1058 = scmp.gt.s32.totalorder %s1057, 0
        %s1059 = scalar_select %p1058, %s1057, 0
        %p1060 = scmp.lt.s32.totalorder %s1059, 16
        %s1061 = scalar_select %p1060, %s1059, 16
        %v1062 = vstv %s1056
        %vm1063 = vcmp.ge.s32.totalorder %v156, %v1062
        %vm1064 = vcmp.ge.s32.totalorder %v157, %v1062
        %v1065 = vstv %s1061
        %vm1066 = vcmp.lt.s32.totalorder %v156, %v1065
        %vm1067 = vcmp.lt.s32.totalorder %v157, %v1065
        %vm1068 = vmand %vm1063, %vm1066
        %vm1069 = vmand %vm1064, %vm1067
        %v1070 = vstv %s1053
        %v1071 = vsub.s32 %v156, %v1070
        %v1072 = vsub.s32 %v157, %v1070
        %v1073 = vadd.s32 %v1071, 3
        %v1074 = vadd.s32 %v1072, 3
        %v1075 = vcvt.s32.f32 %v1073
        %v1076 = vcvt.s32.f32 %v1074
        %v1077 = vadd.f32 %v1075, 1.0
        %v1078 = vadd.f32 %v1076, 1.0
        %v1079 = vsub.f32 %v1077, 4.0
        %v1080 = vsub.f32 %v1078, 4.0
        %v1081 = vmul.f32 %v1079, 0.5714286
        %v1082 = vmul.f32 %v1080, 0.5714286
        %v1083 = vmul.f32 %v1081, %v1081
        %v1084 = vmul.f32 %v1082, %v1082
        %v1085 = vmul.f32 %v1083, -0.5
        %v1086 = vmul.f32 %v1084, -0.5
        %v1087 = vmul.f32 %v1085, 1.442695
        %v1088 = vpow.pop %v1087
        %v1089 = vmul.f32 %v1086, 1.442695
        %v1090 = vpow.pop %v1089
        %v1091 = vsel %vm1068, %v1088, 0.0
        %v1092 = vsel %vm1069, %v1090, 0.0
        %v1093 = vmul.f32 %v1091, %v944
        %v1094 = vmul.f32 %v1091, %v945
        %v1095 = vmul.f32 %v1092, %v944
        %v1096 = vmul.f32 %v1092, %v945
        %s1097 = scalar_lea.vmem %s143, 96 [#allocation10]
        %1098 = vst [vmem:[%s1097] sm:$0xff] %v1093
        %1099 = vst [vmem:[%s1097 + $0x8] sm:$0xff] %v1094
        %1100 = vst [vmem:[%s1097 + $0x10] sm:$0xff] %v1095
        %1101 = vst [vmem:[%s1097 + $0x18] sm:$0xff] %v1096
        %s1102 = sand.u32 %s38, 1
        %s1103 = scalar_lea.sflag [#allocation6], %s1102
        %s1104 = sand.u32 %s38, 1
        %s1105 = smul.addr %s1104, 16
        %s1106 = scalar_lea.vmem [#allocation5], %s1105
        %s1107 = sand.u32 %s29, 1
        %s1108 = scalar_lea.sflag [#allocation8], %s1107
        %s1109 = sand.u32 %s57, 1
        %s1110 = smul.addr %s1109, 32
        %s1111 = scalar_lea.vmem [#allocation7], %s1110
        %s1112 = sand.u32 %s29, 1
        %s1113 = scalar_lea.sflag [#allocation8], %s1112
        %s1114 = sand.u32 %s76, 1
        %s1115 = smul.addr %s1114, 64
        %s1116 = scalar_lea.vmem [#allocation9], %s1115
        %s1117 = sand.u32 %s95, 1
        %s1118 = scalar_lea.sflag [#allocation11], %s1117
        %s1119 = sand.u32 %s95, 1
        %s1120 = smul.addr %s1119, 128
        %s1121 = scalar_lea.vmem [#allocation10], %s1120
        // Predicated region
        $region13: #{tpu_custom_call.1} parent=11 // pred_check
          %p1122 = pneg %p44
        $region14: #{tpu_custom_call.1} parent=11 // pred_check_branch
          %1124 = sbr.rel (%p1122) target = $region16
        $region15: #{tpu_custom_call.1} parent=11 // pred_region
          %s1125 = smul.u32 4, %s29
          %s1127 = ssub.s32 256, 256
          %1128 = vsyncadd %s1103, %s1127
          %s1129 = smul.addr %s1125, 2
          %s1130 = smul.addr %s1129, 32
          %s1131 = scalar_lea.hbm %s2, %s1130
          %s1132 = sshll.u32 %s1106, 4
          %s1133 = int_to_ptr.vmem [resolvable:$true] %s1132
          %1138 = dma.vmem_to_hbm [thread:$0]  %s1133, 256, %s1131, %s1103, 64, 64, 4
        $region16: #{tpu_custom_call.1} parent=11 // pred_fallthru
          _
        // Predicated region
        $region17: #{tpu_custom_call.1} parent=11 // pred_check
          %p1139 = pneg %p63
        $region18: #{tpu_custom_call.1} parent=11 // pred_check_branch
          %1141 = sbr.rel (%p1139) target = $region20
        $region19: #{tpu_custom_call.1} parent=11 // pred_region
          %s1142 = smul.u32 4, %s29
          %s1144 = ssub.s32 512, 512
          %1145 = vsyncadd %s1108, %s1144
          %s1146 = smul.addr %s1142, 2
          %s1147 = smul.addr %s1146, 64
          %s1148 = scalar_lea.hbm %s3, %s1147
          %s1149 = sshll.u32 %s1111, 4
          %s1150 = int_to_ptr.vmem [resolvable:$true] %s1149
          %1155 = dma.vmem_to_hbm [thread:$0]  %s1150, 512, %s1148, %s1108, 128, 128, 8
        $region20: #{tpu_custom_call.1} parent=11 // pred_fallthru
          _
        // Predicated region
        $region21: #{tpu_custom_call.1} parent=11 // pred_check
          %p1156 = pneg %p82
        $region22: #{tpu_custom_call.1} parent=11 // pred_check_branch
          %1158 = sbr.rel (%p1156) target = $region24
        $region23: #{tpu_custom_call.1} parent=11 // pred_region
          %s1159 = smul.u32 4, %s29
          %s1161 = ssub.s32 1024, 1024
          %1162 = vsyncadd %s1113, %s1161
          %s1163 = smul.addr %s1159, 2
          %s1164 = smul.addr %s1163, 128
          %s1165 = scalar_lea.hbm %s4, %s1164
          %s1166 = sshll.u32 %s1116, 4
          %s1167 = int_to_ptr.vmem [resolvable:$true] %s1166
          %1172 = dma.vmem_to_hbm [thread:$0]  %s1167, 1024, %s1165, %s1113, 256, 256, 16
        $region24: #{tpu_custom_call.1} parent=11 // pred_fallthru
          _
        // Predicated region
        $region25: #{tpu_custom_call.1} parent=11 // pred_check
          %p1173 = pneg %p101
        $region26: #{tpu_custom_call.1} parent=11 // pred_check_branch
          %1175 = sbr.rel (%p1173) target = $region28
        $region27: #{tpu_custom_call.1} parent=11 // pred_region
          %s1176 = smul.u32 4, %s29
          %s1178 = ssub.s32 2048, 2048
          %1179 = vsyncadd %s1118, %s1178
          %s1180 = smul.addr %s1176, 4
          %s1181 = smul.addr %s1180, 128
          %s1182 = scalar_lea.hbm %s5, %s1181
          %s1183 = sshll.u32 %s1121, 4
          %s1184 = int_to_ptr.vmem [resolvable:$true] %s1183
          %1189 = dma.vmem_to_hbm [thread:$0]  %s1184, 2048, %s1182, %s1118, 256, 256, 16
        $region28: #{tpu_custom_call.1} parent=11 // pred_fallthru
          _
      $region12: #{tpu_custom_call.1} parent=5 // pred_fallthru
        _
      %p1190 = scmp.le.s32.totalorder 1, %s29
      // Predicated region
      $region29: #{tpu_custom_call.1} parent=5 // pred_check
        %p1191 = pneg %p1190
      $region30: #{tpu_custom_call.1} parent=5 // pred_check_branch
        %1193 = sbr.rel (%p1191) target = $region32
      $region31: #{tpu_custom_call.1} parent=5 // pred_region
        %s1194 = ssub.s32 %s29, 1
        // Predicated region
        $region33: #{tpu_custom_call.1} parent=31 // pred_check
          %p1195 = pneg %p50
        $region34: #{tpu_custom_call.1} parent=31 // pred_check_branch
          %1197 = sbr.rel (%p1195) target = $region36
        $region35: #{tpu_custom_call.1} parent=31 // pred_region
          %s1198 = sand.u32 %s41, 1
          %s1199 = scalar_lea.sflag [#allocation6], %s1198
          %s1200 = sand.u32 %s41, 1
          %s1201 = smul.addr %s1200, 16
          %s1202 = scalar_lea.vmem [#allocation5], %s1201
          %1203 = dma.done %s1199, 256
        $region36: #{tpu_custom_call.1} parent=31 // pred_fallthru
          _
        // Predicated region
        $region37: #{tpu_custom_call.1} parent=31 // pred_check
          %p1204 = pneg %p69
        $region38: #{tpu_custom_call.1} parent=31 // pred_check_branch
          %1206 = sbr.rel (%p1204) target = $region40
        $region39: #{tpu_custom_call.1} parent=31 // pred_region
          %s1207 = sand.u32 %s34, 1
          %s1208 = scalar_lea.sflag [#allocation8], %s1207
          %s1209 = sand.u32 %s60, 1
          %s1210 = smul.addr %s1209, 32
          %s1211 = scalar_lea.vmem [#allocation7], %s1210
          %1212 = dma.done %s1208, 512
        $region40: #{tpu_custom_call.1} parent=31 // pred_fallthru
          _
        // Predicated region
        $region41: #{tpu_custom_call.1} parent=31 // pred_check
          %p1213 = pneg %p88
        $region42: #{tpu_custom_call.1} parent=31 // pred_check_branch
          %1215 = sbr.rel (%p1213) target = $region44
        $region43: #{tpu_custom_call.1} parent=31 // pred_region
          %s1216 = sand.u32 %s34, 1
          %s1217 = scalar_lea.sflag [#allocation8], %s1216
          %s1218 = sand.u32 %s79, 1
          %s1219 = smul.addr %s1218, 64
          %s1220 = scalar_lea.vmem [#allocation9], %s1219
          %1221 = dma.done %s1217, 1024
        $region44: #{tpu_custom_call.1} parent=31 // pred_fallthru
          _
        // Predicated region
        $region45: #{tpu_custom_call.1} parent=31 // pred_check
          %p1222 = pneg %p107
        $region46: #{tpu_custom_call.1} parent=31 // pred_check_branch
          %1224 = sbr.rel (%p1222) target = $region48
        $region47: #{tpu_custom_call.1} parent=31 // pred_region
          %s1225 = sand.u32 %s98, 1
          %s1226 = scalar_lea.sflag [#allocation11], %s1225
          %s1227 = sand.u32 %s98, 1
          %s1228 = smul.addr %s1227, 128
          %s1229 = scalar_lea.vmem [#allocation10], %s1228
          %1230 = dma.done %s1226, 2048
        $region48: #{tpu_custom_call.1} parent=31 // pred_fallthru
          _
      $region32: #{tpu_custom_call.1} parent=5 // pred_fallthru
        _
    $region6: #{tpu_custom_call.1} parent=1 // loop_footer
      %s33 = sadd.s32 1, %s29
    $region7: #{tpu_custom_call.1} parent=1 // loop_footer_branch
      %28 = sbr.rel target = $region3
    $region8: #{tpu_custom_call.1} parent=1 // loop_exit
      _
    %1231 = vsyncpa [#allocation6], 1
    %s1232 = scalar_lea.sflag [#allocation6], 1
    %1233 = vsyncpa %s1232, 1
    %1234 = vsyncpa [#allocation8], 1
    %s1235 = scalar_lea.sflag [#allocation8], 1
    %1236 = vsyncpa %s1235, 1
    %1237 = vsyncpa [#allocation11], 1
    %s1238 = scalar_lea.sflag [#allocation11], 1
    %1239 = vsyncpa %s1238, 1

</llo_original>
